<compile_context>
chip_gen: v7x
topology: tpu7x:2x2x1
jax: 0.10.0
libtpu: 0.0.40
codegen_flags: <defaults>
</compile_context>

<pallas_src>
import functools

import jax
import jax.numpy as jnp
from jax.experimental import pallas as pl
from jax.experimental.pallas import tpu as pltpu


# ----------------------------------------------------------------------------
# Generation-aware VMEM sizing
# ----------------------------------------------------------------------------
@functools.lru_cache(maxsize=None)
def _vmem_capacity_bytes():
    try:
        info = pltpu.get_tpu_info()
        cap = int(getattr(info, "vmem_capacity_bytes", 0) or 0)
        if cap > 0:
            return cap
    except Exception:
        pass
    return 64 * 1024 * 1024          # conservative default (v7x physical VMEM)


def _vmem_budget():
    cap = _vmem_capacity_bytes()
    # ~96 MiB scoped limit on 128 MiB parts (v5e/v6e), ~48 MiB on v7x (64 MiB).
    limit = min((cap * 3) // 4, 96 * 1024 * 1024)
    budget = (limit * 2) // 3        # tile-sizing budget, leaves pipeline headroom
    return limit, budget


# ----------------------------------------------------------------------------
# Kernel 1: conv (3 x K=3*Cin MXU matmuls, kx taps built in-kernel) + streaming
#           per-channel BatchNorm statistics (Chan/Welford merge over the inner
#           "arbitrary" spatial axis).
# ----------------------------------------------------------------------------
def _conv_stats_kernel(p_ref, w_ref, conv_ref, stats_ref, mean_acc, m2_acc,
                       *, dil, width, n_si):
    # p_ref:    (1, 3*Cin, TS)      vertically (ky) shifted rows, compute dtype
    # w_ref:    (3, co_t, 3*Cin)    per-kx weight matrices, compute dtype
    # conv_ref: (1, co_t, TS)       conv output tile, compute dtype
    # stats_ref:(1, 1, 1, co_t, 2)  f32 (mean, M2) per spatial group
    # mean_acc, m2_acc: (co_t, 1)   f32 scratch accumulators
    si = pl.program_id(3)

    p = p_ref[0]                                        # (3*Cin, TS)
    k3, ts = p.shape
    zero = jnp.zeros_like(p)

    # Horizontal (kx) taps: tiles are whole image rows, so a lane roll plus a
    # static "column index" mask reproduces the zero padding exactly.
    col = jax.lax.broadcasted_iota(jnp.int32, (k3, ts), 1) % width
    left = jnp.where(col >= dil, pltpu.roll(p, shift=dil, axis=1), zero)
    right = jnp.where(col < width - dil,
                      pltpu.roll(p, shift=ts - dil, axis=1), zero)

    acc = jnp.dot(w_ref[0], left, preferred_element_type=jnp.float32)
    acc = acc + jnp.dot(w_ref[1], p, preferred_element_type=jnp.float32)
    acc = acc + jnp.dot(w_ref[2], right, preferred_element_type=jnp.float32)
    conv_ref[0] = acc.astype(conv_ref.dtype)

    # Tile statistics from the f32 accumulator (no VMEM re-read).
    inv_ts = 1.0 / ts
    mu_b = jnp.sum(acc, axis=-1, keepdims=True) * inv_ts        # (co_t, 1)
    cen = acc - mu_b
    m2_b = jnp.sum(cen * cen, axis=-1, keepdims=True)           # (co_t, 1)

    @pl.when(si == 0)
    def _():
        mean_acc[...] = mu_b
        m2_acc[...] = m2_b

    @pl.when(si > 0)
    def _():
        cnt_a = si.astype(jnp.float32) * float(ts)   # elements merged so far
        tot = cnt_a + float(ts)
        delta = mu_b - mean_acc[...]
        mean_acc[...] = mean_acc[...] + delta * (float(ts) / tot)
        m2_acc[...] = m2_acc[...] + m2_b + delta * delta * (cnt_a * float(ts) / tot)

    @pl.when(si == n_si - 1)
    def _():
        stats_ref[0, 0, 0, :, 0:1] = mean_acc[...]
        stats_ref[0, 0, 0, :, 1:2] = m2_acc[...]


# ----------------------------------------------------------------------------
# Kernel 2: BatchNorm affine (y = x*scale + shift) + LeakyReLU(0.01)
# ----------------------------------------------------------------------------
def _bn_lrelu_kernel(x_ref, scale_ref, shift_ref, o_ref):
    y = x_ref[0].astype(jnp.float32) * scale_ref[...] + shift_ref[...]
    o_ref[0] = jnp.maximum(y, 0.01 * y)


# ----------------------------------------------------------------------------
# Tile selection
# ----------------------------------------------------------------------------
def _pick_cout_tile(cout):
    if cout > 256 and cout % 256 == 0:
        return 256
    return cout


def _smallest_factor(n):
    f = 2
    while f * f <= n:
        if n % f == 0:
            return f
        f += 1
    return n


def _pick_rows_tile(h, w, k3, co_t, cbytes, budget, rows_cap=None):
    # Per-row footprint: double-buffered patch + conv_out tiles, left/right tap
    # temporaries, the f32 accumulator and the iota mask.
    per_row = w * (4 * k3 * cbytes + 2 * co_t * cbytes + 4 * co_t + 4 * k3)
    fixed = 2 * 3 * co_t * k3 * cbytes + (256 << 10)   # weight dbl-buffer + slack
    max_rows = max(1, (budget - fixed) // per_row)
    if rows_cap is not None:
        max_rows = min(max_rows, rows_cap)
    best = None
    for r in range(1, h + 1):
        if h % r != 0 or r > max_rows:
            continue
        if (r * w) % 128 == 0 or r == h:
            best = r                      # largest legal tile under the budget
    if best is None:
        # No aligned tile fits the budget: take the smallest legal one anyway.
        # TODO(synk): masked tail tiles for images where no row multiple of 128
        # fits VMEM (only relevant for extreme W with huge Cin).
        for r in range(1, h + 1):
            if h % r == 0 and ((r * w) % 128 == 0 or r == h):
                best = r
                break
    return best


def _pick_flat_tile(s, co_t, in_bytes, out_bytes, budget):
    per_lane = co_t * (2 * in_bytes + 2 * out_bytes)
    cap = max(128, budget // per_lane)
    best = None
    c = 128
    while c <= min(s, cap):
        if s % c == 0:
            best = c
        c += 128
    if best is None:
        c = 128
        while c <= s:
            if s % c == 0:
                best = c
                break
            c += 128
    return best if best is not None else s


# ----------------------------------------------------------------------------
# Wrapper (NCHW in / NCHW out, matching the PyTorch module)
# ----------------------------------------------------------------------------
@functools.partial(jax.jit,
                   static_argnames=("dirate", "eps", "compute_dtype",
                                    "spatial_rows_cap"))
def rebnconv_forward(x_nchw, w, b, gamma, beta, *, dirate=1, eps=1e-5,
                     compute_dtype=jnp.bfloat16, spatial_rows_cap=None):
    # The conv bias cancels exactly under training-mode BatchNorm (the batch
    # mean is subtracted per channel), so it is not applied.
    # TODO(synk): BatchNorm running_mean/var momentum updates are a training
    # side effect that does not affect this forward output; not emitted.
    # TODO(synk): if reused with eval-mode (running) statistics, the conv bias
    # must be added back.
    del b
    N, Cin, H, W = x_nchw.shape
    Cout = w.shape[0]
    d = int(dirate)
    S = H * W
    K3 = 3 * Cin
    cbytes = jnp.dtype(compute_dtype).itemsize

    x = x_nchw.astype(jnp.float32)

    # Vertical (ky) im2col only: 3x expansion instead of 9x; horizontal taps are
    # built in-kernel. Operands are cast to the compute dtype (bf16 by default).
    # TODO(synk): fold the vertical taps in-kernel too (needs haloed manual DMA)
    # to reach a 1x activation read.
    xv = jnp.pad(x, ((0, 0), (0, 0), (d, d), (0, 0)))
    taps = [xv[:, :, ky * d: ky * d + H, :] for ky in range(3)]
    patches = jnp.concatenate(taps, axis=1).reshape(N, K3, S).astype(compute_dtype)

    # (Cout, Cin, 3, 3) -> (3_kx, Cout, 3_ky*Cin); column index = ky*Cin + ci.
    wmat = jnp.transpose(w, (3, 0, 2, 1)).reshape(3, Cout, K3).astype(compute_dtype)

    vmem_limit, budget = _vmem_budget()

    co_t = _pick_cout_tile(Cout)
    n_co = Cout // co_t
    rows = _pick_rows_tile(H, W, K3, co_t, cbytes, budget, spatial_rows_cap)
    TS = rows * W
    n_s = H // rows
    # Keep a parallel grid axis of extent >= 2 for megacore (v7x) even when the
    # stats accumulation makes the inner spatial axis "arbitrary".
    if N * n_co >= 2 or n_s < 2:
        n_so = 1
    else:
        n_so = _smallest_factor(n_s)
    n_si = n_s // n_so

    kernel1 = functools.partial(_conv_stats_kernel, dil=d, width=W, n_si=n_si)

    conv_cost = pl.CostEstimate(
        flops=2 * N * S * 9 * Cin * Cout,
        transcendentals=0,
        bytes_accessed=cbytes * (N * n_co * K3 * S + 3 * Cout * K3 + N * Cout * S)
        + 4 * N * n_co * n_so * co_t * 2,
    )

    conv_out, stats = pl.pallas_call(
        kernel1,
        out_shape=(
            jax.ShapeDtypeStruct((N, Cout, S), compute_dtype),
            jax.ShapeDtypeStruct((N, n_co, n_so, co_t, 2), jnp.float32),
        ),
        grid_spec=pltpu.PrefetchScalarGridSpec(
            num_scalar_prefetch=0,
            grid=(N, n_co, n_so, n_si),
            in_specs=[
                pl.BlockSpec((1, K3, TS),
                             lambda n, c, so, si: (n, 0, so * n_si + si)),
                pl.BlockSpec((3, co_t, K3), lambda n, c, so, si: (0, c, 0)),
            ],
            out_specs=(
                pl.BlockSpec((1, co_t, TS),
                             lambda n, c, so, si: (n, c, so * n_si + si)),
                pl.BlockSpec((1, 1, 1, co_t, 2),
                             lambda n, c, so, si: (n, c, so, 0, 0)),
            ),
            scratch_shapes=[pltpu.VMEM((co_t, 1), jnp.float32),
                            pltpu.VMEM((co_t, 1), jnp.float32)],
        ),
        compiler_params=pltpu.CompilerParams(
            dimension_semantics=("parallel", "parallel", "parallel", "arbitrary"),
            vmem_limit_bytes=vmem_limit),
        cost_estimate=conv_cost,
    )(patches, wmat)

    # Chan combine of the per-(batch, spatial-group) partials (equal counts).
    G = N * n_so
    cnt_g = float(n_si * TS)
    means_g = jnp.transpose(stats[..., 0], (1, 3, 0, 2)).reshape(Cout, G)
    m2_g = jnp.transpose(stats[..., 1], (1, 3, 0, 2)).reshape(Cout, G)
    mean = jnp.mean(means_g, axis=1)
    m2_tot = jnp.sum(m2_g, axis=1) + cnt_g * jnp.sum(
        (means_g - mean[:, None]) ** 2, axis=1)
    var = m2_tot / (G * cnt_g)                    # biased variance (training BN)

    scale = gamma.astype(jnp.float32) / jnp.sqrt(var + eps)
    shift = beta.astype(jnp.float32) - mean * scale

    # Pass 2: independent, larger lane-dense tiling (no K term in the budget).
    co_t2 = co_t
    n_co2 = Cout // co_t2
    TS2 = _pick_flat_tile(S, co_t2, cbytes, 4, budget)
    n_s2 = S // TS2

    out = pl.pallas_call(
        _bn_lrelu_kernel,
        out_shape=jax.ShapeDtypeStruct((N, Cout, S), jnp.float32),
        grid_spec=pltpu.PrefetchScalarGridSpec(
            num_scalar_prefetch=0,
            grid=(N, n_co2, n_s2),
            in_specs=[
                pl.BlockSpec((1, co_t2, TS2), lambda n, c, s: (n, c, s)),
                pl.BlockSpec((co_t2, 1), lambda n, c, s: (c, 0)),
                pl.BlockSpec((co_t2, 1), lambda n, c, s: (c, 0)),
            ],
            out_specs=pl.BlockSpec((1, co_t2, TS2), lambda n, c, s: (n, c, s)),
        ),
        compiler_params=pltpu.CompilerParams(
            dimension_semantics=("parallel", "parallel", "parallel"),
            vmem_limit_bytes=vmem_limit),
    )(conv_out, scale.reshape(Cout, 1), shift.reshape(Cout, 1))

    return out.reshape(N, Cout, H, W)


# ----------------------------------------------------------------------------
# Pure-JAX reference (keeps the conv bias; proves the bias cancels under BN)
# ----------------------------------------------------------------------------
def rebnconv_ref(x, w, b, gamma, beta, *, dirate=1, eps=1e-5):
    conv = jax.lax.conv_general_dilated(
        x, w, window_strides=(1, 1),
        padding=[(dirate, dirate), (dirate, dirate)],
        rhs_dilation=(dirate, dirate),
        dimension_numbers=("NCHW", "OIHW", "NCHW"))
    conv = conv + b[None, :, None, None]
    mean = jnp.mean(conv, axis=(0, 2, 3), keepdims=True)
    var = jnp.var(conv, axis=(0, 2, 3), keepdims=True)
    y = (conv - mean) / jnp.sqrt(var + eps)
    y = y * gamma[None, :, None, None] + beta[None, :, None, None]
    return jnp.where(y >= 0, y, 0.01 * y)


def _run_case(key, N, Cin, Cout, H, W, dirate, rows_cap=None):
    k_x, k_w, k_b, k_g, k_be = jax.random.split(key, 5)
    x = jax.random.normal(k_x, (N, Cin, H, W), dtype=jnp.float32)
    w = jax.random.normal(k_w, (Cout, Cin, 3, 3), dtype=jnp.float32) * 0.1
    b = jax.random.normal(k_b, (Cout,), dtype=jnp.float32) * 0.5   # cancels under BN
    gamma = 1.0 + 0.2 * jax.random.normal(k_g, (Cout,), dtype=jnp.float32)
    beta = 0.1 * jax.random.normal(k_be, (Cout,), dtype=jnp.float32)

    ref = rebnconv_ref(x, w, b, gamma, beta, dirate=dirate)

    # Exact path (f32 MXU operands): tight tolerance.
    out32 = jax.block_until_ready(
        rebnconv_forward(x, w, b, gamma, beta, dirate=dirate,
                         compute_dtype=jnp.float32, spatial_rows_cap=rows_cap))
    assert out32.shape == (N, Cout, H, W)
    err32 = float(jnp.max(jnp.abs(out32 - ref)))
    assert jnp.allclose(out32, ref, rtol=1e-4, atol=1e-4), err32

    # Default fast path (bf16 MXU operands, f32 accumulation / BN math).
    out16 = jax.block_until_ready(
        rebnconv_forward(x, w, b, gamma, beta, dirate=dirate,
                         spatial_rows_cap=rows_cap))
    err16 = float(jnp.max(jnp.abs(out16 - ref)))
    assert jnp.allclose(out16, ref, rtol=1e-1, atol=1e-1), err16


if __name__ == "__main__":
    root = jax.random.PRNGKey(0)
    k1, k2, k3 = jax.random.split(root, 3)

    # Single-tile layers (dirate 1 and 2).
    _run_case(k1, N=2, Cin=4, Cout=8, H=16, W=16, dirate=1)
    _run_case(k2, N=2, Cin=4, Cout=8, H=16, W=16, dirate=2)
    # Module-default channels (3 -> 3), N=1, forced multi-tile spatial grid to
    # exercise the streaming stats merge and the parallel/arbitrary split.
    _run_case(k3, N=1, Cin=3, Cout=3, H=32, W=32, dirate=1, rows_cap=8)

    print("KERNEL_OK")
</pallas_src>

<mosaic_0001>
module attributes {stable_mosaic.version = 11 : i64} {
  func.func @_conv_stats_kernel(%arg0: i32, %arg1: i32, %arg2: i32, %arg3: i32, %arg4: memref<1x12x256xf32, #tpu.memory_space<vmem>>, %arg5: memref<3x8x12xf32, #tpu.memory_space<vmem>>, %arg6: memref<1x8x256xf32, #tpu.memory_space<vmem>>, %arg7: memref<1x1x1x8x2xf32, #tpu.memory_space<vmem>>, %arg8: memref<8x1xf32, #tpu.memory_space<vmem>>, %arg9: memref<8x1xf32, #tpu.memory_space<vmem>>) attributes {dimension_semantics = [#tpu.dimension_semantics<parallel>, #tpu.dimension_semantics<parallel>, #tpu.dimension_semantics<parallel>, #tpu.dimension_semantics<arbitrary>], iteration_bounds = array<i64: 2, 1, 1, 1>, scalar_prefetch = 0 : i64, scratch_operands = 2 : i64, tpu.core_type = #tpu.core_type<tc>, window_params = [{transform_indices = @transform_0, window_bounds = array<i64: 1, 12, 256>}, {transform_indices = @transform_1, window_bounds = array<i64: 3, 8, 12>}, {transform_indices = @transform_2, window_bounds = array<i64: 1, 8, 256>}, {transform_indices = @transform_3, window_bounds = array<i64: 1, 1, 1, 8, 2>}]} {
    %c0 = arith.constant 0 : index
    %c0_0 = arith.constant 0 : index
    %c0_1 = arith.constant 0 : index
    %0 = vector.load %arg4[%c0, %c0_0, %c0_1] : memref<1x12x256xf32, #tpu.memory_space<vmem>>, vector<1x12x256xf32>
    %1 = vector.shape_cast %0 : vector<1x12x256xf32> to vector<12x256xf32>
    %cst = arith.constant 0.000000e+00 : f32
    %2 = vector.broadcast %cst : f32 to vector<12x256xf32>
    %3 = tpu.iota {dimensions = array<i32: 1>} : vector<12x256xi32>
    %c16_i32 = arith.constant 16 : i32
    %c0_i32 = arith.constant 0 : i32
    %4 = arith.cmpi eq, %c16_i32, %c0_i32 : i32
    %c1_i32 = arith.constant 1 : i32
    %5 = arith.select %4, %c1_i32, %c16_i32 : i32
    %6 = vector.broadcast %5 : i32 to vector<12x256xi32>
    %7 = arith.remsi %3, %6 : vector<12x256xi32>
    %c0_i32_2 = arith.constant 0 : i32
    %8 = vector.broadcast %c0_i32_2 : i32 to vector<12x256xi32>
    %9 = arith.cmpi ne, %7, %8 : vector<12x256xi32>
    %c0_i32_3 = arith.constant 0 : i32
    %10 = vector.broadcast %c0_i32_3 : i32 to vector<12x256xi32>
    %11 = arith.cmpi slt, %7, %10 : vector<12x256xi32>
    %c0_i32_4 = arith.constant 0 : i32
    %12 = arith.cmpi slt, %5, %c0_i32_4 : i32
    %13 = vector.broadcast %12 : i1 to vector<12x256xi1>
    %14 = vector.broadcast %13 : vector<12x256xi1> to vector<12x256xi1>
    %15 = arith.xori %11, %14 : vector<12x256xi1>
    %16 = arith.andi %15, %9 : vector<12x256xi1>
    %17 = vector.broadcast %5 : i32 to vector<12x256xi32>
    %18 = arith.addi %7, %17 : vector<12x256xi32>
    %19 = arith.select %16, %18, %7 : vector<12x256xi1>, vector<12x256xi32>
    %c1_i32_5 = arith.constant 1 : i32
    %20 = vector.broadcast %c1_i32_5 : i32 to vector<12x256xi32>
    %21 = arith.cmpi sge, %19, %20 : vector<12x256xi32>
    %c1_i32_6 = arith.constant 1 : i32
    %22 = tpu.dynamic_rotate %1 by %c1_i32_6 dim 1 : vector<12x256xf32>, i32 -> vector<12x256xf32>
    %23 = arith.select %21, %22, %2 : vector<12x256xi1>, vector<12x256xf32>
    %c15_i32 = arith.constant 15 : i32
    %24 = vector.broadcast %c15_i32 : i32 to vector<12x256xi32>
    %25 = arith.cmpi slt, %19, %24 : vector<12x256xi32>
    %c255_i32 = arith.constant 255 : i32
    %26 = tpu.dynamic_rotate %1 by %c255_i32 dim 1 : vector<12x256xf32>, i32 -> vector<12x256xf32>
    %27 = arith.select %25, %26, %2 : vector<12x256xi1>, vector<12x256xf32>
    %c0_7 = arith.constant 0 : index
    %c0_8 = arith.constant 0 : index
    %c0_9 = arith.constant 0 : index
    %28 = vector.load %arg5[%c0_7, %c0_8, %c0_9] : memref<3x8x12xf32, #tpu.memory_space<vmem>>, vector<1x8x12xf32>
    %29 = vector.shape_cast %28 : vector<1x8x12xf32> to vector<8x12xf32>
    %cst_10 = arith.constant dense<0.000000e+00> : vector<8x256xf32>
    %30 = tpu.matmul %29, %23, %cst_10 {dimension_numbers = #tpu.dot_dimension_numbers<[1], [0], [0], [1], [0, 0, 1, 1], [], []>} : vector<8x12xf32>, vector<12x256xf32>, vector<8x256xf32> -> vector<8x256xf32>
    %c1 = arith.constant 1 : index
    %c0_11 = arith.constant 0 : index
    %c0_12 = arith.constant 0 : index
    %31 = vector.load %arg5[%c1, %c0_11, %c0_12] : memref<3x8x12xf32, #tpu.memory_space<vmem>>, vector<1x8x12xf32>
    %32 = vector.shape_cast %31 : vector<1x8x12xf32> to vector<8x12xf32>
    %cst_13 = arith.constant dense<0.000000e+00> : vector<8x256xf32>
    %33 = tpu.matmul %32, %1, %cst_13 {dimension_numbers = #tpu.dot_dimension_numbers<[1], [0], [0], [1], [0, 0, 1, 1], [], []>} : vector<8x12xf32>, vector<12x256xf32>, vector<8x256xf32> -> vector<8x256xf32>
    %34 = arith.addf %30, %33 : vector<8x256xf32>
    %c2 = arith.constant 2 : index
    %c0_14 = arith.constant 0 : index
    %c0_15 = arith.constant 0 : index
    %35 = vector.load %arg5[%c2, %c0_14, %c0_15] : memref<3x8x12xf32, #tpu.memory_space<vmem>>, vector<1x8x12xf32>
    %36 = vector.shape_cast %35 : vector<1x8x12xf32> to vector<8x12xf32>
    %cst_16 = arith.constant dense<0.000000e+00> : vector<8x256xf32>
    %37 = tpu.matmul %36, %27, %cst_16 {dimension_numbers = #tpu.dot_dimension_numbers<[1], [0], [0], [1], [0, 0, 1, 1], [], []>} : vector<8x12xf32>, vector<12x256xf32>, vector<8x256xf32> -> vector<8x256xf32>
    %38 = arith.addf %34, %37 : vector<8x256xf32>
    %c0_17 = arith.constant 0 : index
    %c0_18 = arith.constant 0 : index
    %c0_19 = arith.constant 0 : index
    %39 = vector.load %arg6[%c0_17, %c0_18, %c0_19] : memref<1x8x256xf32, #tpu.memory_space<vmem>>, vector<1x8x256xf32>
    %40 = vector.shape_cast %39 : vector<1x8x256xf32> to vector<8x256xf32>
    %41 = vector.shape_cast %38 : vector<8x256xf32> to vector<1x8x256xf32>
    tpu.vector_store %arg6[%c0_17, %c0_18, %c0_19], %41 {strides = array<i32>} : memref<1x8x256xf32, #tpu.memory_space<vmem>>, vector<1x8x256xf32>,
    %cst_20 = arith.constant dense<0.000000e+00> : vector<8xf32>
    %42 = vector.multi_reduction <add>, %38, %cst_20 [1] : vector<8x256xf32> to vector<8xf32>
    %43 = vector.shape_cast %42 : vector<8xf32> to vector<8x1xf32>
    %cst_21 = arith.constant 3.906250e-03 : f32
    %44 = vector.broadcast %cst_21 : f32 to vector<8x1xf32>
    %45 = arith.mulf %43, %44 : vector<8x1xf32>
    %46 = vector.broadcast %45 : vector<8x1xf32> to vector<8x256xf32>
    %47 = arith.subf %38, %46 : vector<8x256xf32>
    %48 = arith.mulf %47, %47 : vector<8x256xf32>
    %cst_22 = arith.constant dense<0.000000e+00> : vector<8xf32>
    %49 = vector.multi_reduction <add>, %48, %cst_22 [1] : vector<8x256xf32> to vector<8xf32>
    %50 = vector.shape_cast %49 : vector<8xf32> to vector<8x1xf32>
    %c0_i32_23 = arith.constant 0 : i32
    %51 = arith.cmpi eq, %arg3, %c0_i32_23 : i32
    %52 = arith.extui %51 : i1 to i32
    %c0_i32_24 = arith.constant 0 : i32
    %53 = arith.cmpi ne, %52, %c0_i32_24 : i32
    scf.if %53 {
      %c0_29 = arith.constant 0 : index
      %c0_30 = arith.constant 0 : index
      %60 = vector.load %arg8[%c0_29, %c0_30] : memref<8x1xf32, #tpu.memory_space<vmem>>, vector<8x1xf32>
      tpu.vector_store %arg8[%c0_29, %c0_30], %45 {strides = array<i32>} : memref<8x1xf32, #tpu.memory_space<vmem>>, vector<8x1xf32>,
      %c0_31 = arith.constant 0 : index
      %c0_32 = arith.constant 0 : index
      %61 = vector.load %arg9[%c0_31, %c0_32] : memref<8x1xf32, #tpu.memory_space<vmem>>, vector<8x1xf32>
      tpu.vector_store %arg9[%c0_31, %c0_32], %50 {strides = array<i32>} : memref<8x1xf32, #tpu.memory_space<vmem>>, vector<8x1xf32>,
    } else {
    }
    %c0_i32_25 = arith.constant 0 : i32
    %54 = arith.cmpi sgt, %arg3, %c0_i32_25 : i32
    %55 = arith.extui %54 : i1 to i32
    %c0_i32_26 = arith.constant 0 : i32
    %56 = arith.cmpi ne, %55, %c0_i32_26 : i32
    scf.if %56 {
      %60 = arith.sitofp %arg3 : i32 to f32
      %cst_29 = arith.constant 2.560000e+02 : f32
      %61 = arith.mulf %60, %cst_29 : f32
      %cst_30 = arith.constant 2.560000e+02 : f32
      %62 = arith.addf %61, %cst_30 : f32
      %c0_31 = arith.constant 0 : index
      %c0_32 = arith.constant 0 : index
      %63 = vector.load %arg8[%c0_31, %c0_32] : memref<8x1xf32, #tpu.memory_space<vmem>>, vector<8x1xf32>
      %64 = arith.subf %45, %63 : vector<8x1xf32>
      %c0_33 = arith.constant 0 : index
      %c0_34 = arith.constant 0 : index
      %65 = vector.load %arg8[%c0_33, %c0_34] : memref<8x1xf32, #tpu.memory_space<vmem>>, vector<8x1xf32>
      %cst_35 = arith.constant 2.560000e+02 : f32
      %66 = arith.divf %cst_35, %62 : f32
      %67 = vector.broadcast %66 : f32 to vector<8x1xf32>
      %68 = arith.mulf %64, %67 : vector<8x1xf32>
      %69 = arith.addf %65, %68 : vector<8x1xf32>
      %c0_36 = arith.constant 0 : index
      %c0_37 = arith.constant 0 : index
      %70 = vector.load %arg8[%c0_36, %c0_37] : memref<8x1xf32, #tpu.memory_space<vmem>>, vector<8x1xf32>
      tpu.vector_store %arg8[%c0_36, %c0_37], %69 {strides = array<i32>} : memref<8x1xf32, #tpu.memory_space<vmem>>, vector<8x1xf32>,
      %c0_38 = arith.constant 0 : index
      %c0_39 = arith.constant 0 : index
      %71 = vector.load %arg9[%c0_38, %c0_39] : memref<8x1xf32, #tpu.memory_space<vmem>>, vector<8x1xf32>
      %72 = arith.addf %71, %50 : vector<8x1xf32>
      %73 = arith.mulf %64, %64 : vector<8x1xf32>
      %cst_40 = arith.constant 2.560000e+02 : f32
      %74 = arith.mulf %61, %cst_40 : f32
      %75 = arith.divf %74, %62 : f32
      %76 = vector.broadcast %75 : f32 to vector<8x1xf32>
      %77 = arith.mulf %73, %76 : vector<8x1xf32>
      %78 = arith.addf %72, %77 : vector<8x1xf32>
      %c0_41 = arith.constant 0 : index
      %c0_42 = arith.constant 0 : index
      %79 = vector.load %arg9[%c0_41, %c0_42] : memref<8x1xf32, #tpu.memory_space<vmem>>, vector<8x1xf32>
      tpu.vector_store %arg9[%c0_41, %c0_42], %78 {strides = array<i32>} : memref<8x1xf32, #tpu.memory_space<vmem>>, vector<8x1xf32>,
    } else {
    }
    %c0_i32_27 = arith.constant 0 : i32
    %57 = arith.cmpi eq, %arg3, %c0_i32_27 : i32
    %58 = arith.extui %57 : i1 to i32
    %c0_i32_28 = arith.constant 0 : i32
    %59 = arith.cmpi ne, %58, %c0_i32_28 : i32
    scf.if %59 {
      %c0_29 = arith.constant 0 : index
      %c0_30 = arith.constant 0 : index
      %60 = vector.load %arg8[%c0_29, %c0_30] : memref<8x1xf32, #tpu.memory_space<vmem>>, vector<8x1xf32>
      %c0_31 = arith.constant 0 : index
      %c0_32 = arith.constant 0 : index
      %c0_33 = arith.constant 0 : index
      %c0_34 = arith.constant 0 : index
      %c0_35 = arith.constant 0 : index
      %61 = vector.load %arg7[%c0_31, %c0_32, %c0_33, %c0_34, %c0_35] : memref<1x1x1x8x2xf32, #tpu.memory_space<vmem>>, vector<1x1x1x8x1xf32>
      %62 = vector.shape_cast %61 : vector<1x1x1x8x1xf32> to vector<8x1xf32>
      %63 = vector.shape_cast %60 : vector<8x1xf32> to vector<1x1x1x8x1xf32>
      tpu.vector_store %arg7[%c0_31, %c0_32, %c0_33, %c0_34, %c0_35], %63 {strides = array<i32>} : memref<1x1x1x8x2xf32, #tpu.memory_space<vmem>>, vector<1x1x1x8x1xf32>,
      %c0_36 = arith.constant 0 : index
      %c0_37 = arith.constant 0 : index
      %64 = vector.load %arg9[%c0_36, %c0_37] : memref<8x1xf32, #tpu.memory_space<vmem>>, vector<8x1xf32>
      %c0_38 = arith.constant 0 : index
      %c0_39 = arith.constant 0 : index
      %c0_40 = arith.constant 0 : index
      %c0_41 = arith.constant 0 : index
      %c1_42 = arith.constant 1 : index
      %65 = vector.load %arg7[%c0_38, %c0_39, %c0_40, %c0_41, %c1_42] : memref<1x1x1x8x2xf32, #tpu.memory_space<vmem>>, vector<1x1x1x8x1xf32>
      %66 = vector.shape_cast %65 : vector<1x1x1x8x1xf32> to vector<8x1xf32>
      %67 = vector.shape_cast %64 : vector<8x1xf32> to vector<1x1x1x8x1xf32>
      tpu.vector_store %arg7[%c0_38, %c0_39, %c0_40, %c0_41, %c1_42], %67 {strides = array<i32>} : memref<1x1x1x8x2xf32, #tpu.memory_space<vmem>>, vector<1x1x1x8x1xf32>,
    } else {
    }
    return
  }
  func.func @transform_0(%arg0: i32, %arg1: i32, %arg2: i32, %arg3: i32) -> (i32, i32, i32) {
    %c1_i32 = arith.constant 1 : i32
    %0 = arith.muli %arg2, %c1_i32 : i32
    %1 = arith.addi %0, %arg3 : i32
    %c0_i32 = arith.constant 0 : i32
    %c0_i32_0 = arith.constant 0 : i32
    return %arg0, %c0_i32, %1 : i32, i32, i32
  }
  func.func @transform_1(%arg0: i32, %arg1: i32, %arg2: i32, %arg3: i32) -> (i32, i32, i32) {
    %c0_i32 = arith.constant 0 : i32
    %c0_i32_0 = arith.constant 0 : i32
    %c0_i32_1 = arith.constant 0 : i32
    return %c0_i32, %arg1, %c0_i32_0 : i32, i32, i32
  }
  func.func @transform_2(%arg0: i32, %arg1: i32, %arg2: i32, %arg3: i32) -> (i32, i32, i32) {
    %c1_i32 = arith.constant 1 : i32
    %0 = arith.muli %arg2, %c1_i32 : i32
    %1 = arith.addi %0, %arg3 : i32
    %c0_i32 = arith.constant 0 : i32
    return %arg0, %arg1, %1 : i32, i32, i32
  }
  func.func @transform_3(%arg0: i32, %arg1: i32, %arg2: i32, %arg3: i32) -> (i32, i32, i32, i32, i32) {
    %c0_i32 = arith.constant 0 : i32
    %c0_i32_0 = arith.constant 0 : i32
    %c0_i32_1 = arith.constant 0 : i32
    return %arg0, %arg1, %arg2, %c0_i32, %c0_i32_0 : i32, i32, i32, i32, i32
  }
}

module attributes {stable_mosaic.version = 11 : i64} {
  func.func @_bn_lrelu_kernel(%arg0: i32, %arg1: i32, %arg2: i32, %arg3: memref<1x8x256xf32, #tpu.memory_space<vmem>>, %arg4: memref<8x1xf32, #tpu.memory_space<vmem>>, %arg5: memref<8x1xf32, #tpu.memory_space<vmem>>, %arg6: memref<1x8x256xf32, #tpu.memory_space<vmem>>) attributes {dimension_semantics = [#tpu.dimension_semantics<parallel>, #tpu.dimension_semantics<parallel>, #tpu.dimension_semantics<parallel>], iteration_bounds = array<i64: 2, 1, 1>, scalar_prefetch = 0 : i64, scratch_operands = 0 : i64, tpu.core_type = #tpu.core_type<tc>, window_params = [{transform_indices = @transform_0, window_bounds = array<i64: 1, 8, 256>}, {transform_indices = @transform_1, window_bounds = array<i64: 8, 1>}, {transform_indices = @transform_2, window_bounds = array<i64: 8, 1>}, {transform_indices = @transform_3, window_bounds = array<i64: 1, 8, 256>}]} {
    %c0 = arith.constant 0 : index
    %c0_0 = arith.constant 0 : index
    %c0_1 = arith.constant 0 : index
    %0 = vector.load %arg3[%c0, %c0_0, %c0_1] : memref<1x8x256xf32, #tpu.memory_space<vmem>>, vector<1x8x256xf32>
    %1 = vector.shape_cast %0 : vector<1x8x256xf32> to vector<8x256xf32>
    %c0_2 = arith.constant 0 : index
    %c0_3 = arith.constant 0 : index
    %2 = vector.load %arg4[%c0_2, %c0_3] : memref<8x1xf32, #tpu.memory_space<vmem>>, vector<8x1xf32>
    %3 = vector.broadcast %2 : vector<8x1xf32> to vector<8x256xf32>
    %4 = arith.mulf %1, %3 : vector<8x256xf32>
    %c0_4 = arith.constant 0 : index
    %c0_5 = arith.constant 0 : index
    %5 = vector.load %arg5[%c0_4, %c0_5] : memref<8x1xf32, #tpu.memory_space<vmem>>, vector<8x1xf32>
    %6 = vector.broadcast %5 : vector<8x1xf32> to vector<8x256xf32>
    %7 = arith.addf %4, %6 : vector<8x256xf32>
    %cst = arith.constant 0.00999999977 : f32
    %8 = vector.broadcast %cst : f32 to vector<8x256xf32>
    %9 = arith.mulf %8, %7 : vector<8x256xf32>
    %10 = arith.maximumf %7, %9 : vector<8x256xf32>
    %c0_6 = arith.constant 0 : index
    %c0_7 = arith.constant 0 : index
    %c0_8 = arith.constant 0 : index
    %11 = vector.load %arg6[%c0_6, %c0_7, %c0_8] : memref<1x8x256xf32, #tpu.memory_space<vmem>>, vector<1x8x256xf32>
    %12 = vector.shape_cast %11 : vector<1x8x256xf32> to vector<8x256xf32>
    %13 = vector.shape_cast %10 : vector<8x256xf32> to vector<1x8x256xf32>
    tpu.vector_store %arg6[%c0_6, %c0_7, %c0_8], %13 {strides = array<i32>} : memref<1x8x256xf32, #tpu.memory_space<vmem>>, vector<1x8x256xf32>,
    return
  }
  func.func @transform_0(%arg0: i32, %arg1: i32, %arg2: i32) -> (i32, i32, i32) {
    %c0_i32 = arith.constant 0 : i32
    return %arg0, %arg1, %arg2 : i32, i32, i32
  }
  func.func @transform_1(%arg0: i32, %arg1: i32, %arg2: i32) -> (i32, i32) {
    %c0_i32 = arith.constant 0 : i32
    %c0_i32_0 = arith.constant 0 : i32
    return %arg1, %c0_i32 : i32, i32
  }
  func.func @transform_2(%arg0: i32, %arg1: i32, %arg2: i32) -> (i32, i32) {
    %c0_i32 = arith.constant 0 : i32
    %c0_i32_0 = arith.constant 0 : i32
    return %arg1, %c0_i32 : i32, i32
  }
  func.func @transform_3(%arg0: i32, %arg1: i32, %arg2: i32) -> (i32, i32, i32) {
    %c0_i32 = arith.constant 0 : i32
    return %arg0, %arg1, %arg2 : i32, i32, i32
  }
}

</mosaic_0001>

<llo_original>
// kernel: rebnconv_forward.3
$region0: #{rebnconv_forward.3}
  #allocation0 [shape = 'u32[]', space=smem, size = 0x4, offset = 0x4, fixed_abs, tag = 'smem constant byte address 0x4 - core index']
  #allocation1 [shape = 'u32[144,128]{1,0:T(1,128)}', space=vmem, size = 0x12000, scoped, tag = 'internal scratch']
  %s0 = inlined_call_operand.vmem [shape: f32[2,8,256], index: 0, kind: input, shape index: {}]
  %s1 = inlined_call_operand.vmem [shape: f32[8,1], index: 1, kind: input, shape index: {}]
  %s2 = inlined_call_operand.vmem [shape: f32[8,1], index: 2, kind: input, shape index: {}]
  %s3 = inlined_call_operand.vmem [shape: f32[2,8,256], index: 3, kind: output, shape index: {}]
  %s4 = sld [smem:[#allocation0]]
  $region45: #{rebnconv_forward.3} parent=0
    _
  %s6 = ssub.s32 1, %s4
  %s7 = scalar_select 0, %s6, %s4
  loop: start=0, step=1, limit=4
  $region2: #{rebnconv_forward.3} parent=0 // loop_pre_header
    _
  $region3: #{rebnconv_forward.3} parent=0 // loop_header
    %s9 = sphi 0, %s13
    %p10 = scmp.ge.s32.totalorder %s9, 4
    %s16 = sphi 0, %s35
    %s17 = sphi 0, %s31
    %s18 = sphi 0, %s27
    %s19 = sphi 0, %s16
    %s20 = sphi 0, %s17
    %s21 = sphi 0, %s18
    %s22 = sphi 0, %s19
    %s23 = sphi 0, %s20
    %s24 = sphi 0, %s21
    %s42 = sphi 0, %s44
    %s45 = sphi 0, %s42
    %s46 = sphi 0, %s45
    %s62 = sphi 0, %s46
    %s68 = sphi 0, %s70
    %s71 = sphi 0, %s68
    %s72 = sphi 0, %s71
    %s88 = sphi 0, %s72
    %s94 = sphi 0, %s96
    %s97 = sphi 0, %s94
    %s98 = sphi 0, %s97
    %s114 = sphi 0, %s98
    %s124 = sphi 0, %s126
    %s127 = sphi 0, %s124
    %s128 = sphi 0, %s127
    %s144 = sphi 0, %s128
  $region4: #{rebnconv_forward.3} parent=0 // loop_header_branch
    %12 = sbr.rel (%p10) target = $region8
  $region5: #{rebnconv_forward.3} parent=0 // loop_body
    %s14 = ssub.s32 %s9, 1
    %s15 = ssub.s32 %s9, 2
    %s25 = sadd.s32 1, %s18
    %p26 = scmp.ge.s32.totalorder %s25, 1
    %s27 = scalar_select %p26, 0, %s25
    %s28 = sadd.s32 1, %s17
    %s29 = scalar_select %p26, %s28, %s17
    %p30 = scmp.ge.s32.totalorder %s29, 1
    %s31 = scalar_select %p30, 0, %s29
    %s32 = sadd.s32 1, %s16
    %s33 = scalar_select %p30, %s32, %s16
    %p34 = scmp.ge.s32.totalorder %s33, 2
    %s35 = scalar_select %p34, 0, %s33
    %s36 = ssub.s32 %s16, %s35
    %s37 = ssub.s32 %s17, %s31
    %s38 = sor.u32 %s36, %s37
    %s39 = ssub.s32 %s18, %s27
    %s40 = sor.u32 %s38, %s39
    %p41 = scmp.eq.s32.totalorder %s40, 0
    %s43 = sadd.s32 %s42, 1
    %s44 = scalar_select %p41, %s42, %s43
    %p47 = pneg %p41
    %p48 = scmp.eq.s32.totalorder %s9, 1
    %p49 = por %p47, %p48
    %p50 = scmp.ne.s32.totalorder %s42, %s45
    %p51 = scmp.eq.s32.totalorder %s9, 0
    %p52 = por %p50, %p51
    %p53 = scmp.ne.s32.totalorder %s42, %s45
    %p54 = scmp.eq.s32.totalorder %s14, 1
    %p55 = por %p53, %p54
    %p56 = scmp.ne.s32.totalorder %s45, %s46
    %p57 = scmp.eq.s32.totalorder %s14, 0
    %p58 = por %p56, %p57
    %p59 = scmp.ne.s32.totalorder %s45, %s46
    %p60 = scmp.eq.s32.totalorder %s15, 1
    %p61 = por %p59, %p60
    %p63 = scmp.ne.s32.totalorder %s46, %s62
    %p64 = scmp.eq.s32.totalorder %s15, 0
    %p65 = por %p63, %p64
    %s66 = ssub.s32 %s17, %s31
    %p67 = scmp.eq.s32.totalorder %s66, 0
    %s69 = sadd.s32 %s68, 1
    %s70 = scalar_select %p67, %s68, %s69
    %p73 = pneg %p67
    %p74 = scmp.eq.s32.totalorder %s9, 1
    %p75 = por %p73, %p74
    %p76 = scmp.ne.s32.totalorder %s68, %s71
    %p77 = scmp.eq.s32.totalorder %s9, 0
    %p78 = por %p76, %p77
    %p79 = scmp.ne.s32.totalorder %s68, %s71
    %p80 = scmp.eq.s32.totalorder %s14, 1
    %p81 = por %p79, %p80
    %p82 = scmp.ne.s32.totalorder %s71, %s72
    %p83 = scmp.eq.s32.totalorder %s14, 0
    %p84 = por %p82, %p83
    %p85 = scmp.ne.s32.totalorder %s71, %s72
    %p86 = scmp.eq.s32.totalorder %s15, 1
    %p87 = por %p85, %p86
    %p89 = scmp.ne.s32.totalorder %s72, %s88
    %p90 = scmp.eq.s32.totalorder %s15, 0
    %p91 = por %p89, %p90
    %s92 = ssub.s32 %s17, %s31
    %p93 = scmp.eq.s32.totalorder %s92, 0
    %s95 = sadd.s32 %s94, 1
    %s96 = scalar_select %p93, %s94, %s95
    %p99 = pneg %p93
    %p100 = scmp.eq.s32.totalorder %s9, 1
    %p101 = por %p99, %p100
    %p102 = scmp.ne.s32.totalorder %s94, %s97
    %p103 = scmp.eq.s32.totalorder %s9, 0
    %p104 = por %p102, %p103
    %p105 = scmp.ne.s32.totalorder %s94, %s97
    %p106 = scmp.eq.s32.totalorder %s14, 1
    %p107 = por %p105, %p106
    %p108 = scmp.ne.s32.totalorder %s97, %s98
    %p109 = scmp.eq.s32.totalorder %s14, 0
    %p110 = por %p108, %p109
    %p111 = scmp.ne.s32.totalorder %s97, %s98
    %p112 = scmp.eq.s32.totalorder %s15, 1
    %p113 = por %p111, %p112
    %p115 = scmp.ne.s32.totalorder %s98, %s114
    %p116 = scmp.eq.s32.totalorder %s15, 0
    %p117 = por %p115, %p116
    %s118 = ssub.s32 %s16, %s35
    %s119 = ssub.s32 %s17, %s31
    %s120 = sor.u32 %s118, %s119
    %s121 = ssub.s32 %s18, %s27
    %s122 = sor.u32 %s120, %s121
    %p123 = scmp.eq.s32.totalorder %s122, 0
    %s125 = sadd.s32 %s124, 1
    %s126 = scalar_select %p123, %s124, %s125
    %p129 = pneg %p123
    %p130 = scmp.eq.s32.totalorder %s9, 1
    %p131 = por %p129, %p130
    %p132 = scmp.ne.s32.totalorder %s124, %s127
    %p133 = scmp.eq.s32.totalorder %s9, 0
    %p134 = por %p132, %p133
    %p135 = scmp.ne.s32.totalorder %s124, %s127
    %p136 = scmp.eq.s32.totalorder %s14, 1
    %p137 = por %p135, %p136
    %p138 = scmp.ne.s32.totalorder %s127, %s128
    %p139 = scmp.eq.s32.totalorder %s14, 0
    %p140 = por %p138, %p139
    %p141 = scmp.ne.s32.totalorder %s127, %s128
    %p142 = scmp.eq.s32.totalorder %s15, 1
    %p143 = por %p141, %p142
    %p145 = scmp.ne.s32.totalorder %s128, %s144
    %p146 = scmp.eq.s32.totalorder %s15, 0
    %p147 = por %p145, %p146
    %p148 = scmp.le.s32.totalorder 1, %s9
    %p149 = scmp.lt.s32.totalorder %s9, 3
    %p150 = pnand %p148, %p149
    %p151 = pneg %p150
    // Predicated region
    $region9: #{rebnconv_forward.3} parent=5 // pred_check
      _
    $region10: #{rebnconv_forward.3} parent=5 // pred_check_branch
      %153 = sbr.rel (%p150) target = $region12
    $region11: #{rebnconv_forward.3} parent=5 // pred_region
      %s154 = ssub.s32 %s9, 1
      // Predicated region
      $region13: #{rebnconv_forward.3} parent=11 // pred_check
        %p155 = pneg %p84
      $region14: #{rebnconv_forward.3} parent=11 // pred_check_branch
        %157 = sbr.rel (%p155) target = $region16
      $region15: #{rebnconv_forward.3} parent=11 // pred_region
        %p158 = scmp.lt.s32.totalorder %s20, 0
        %s159 = scalar_select %p158, %s20, 0
        %s160 = smul.addr %s159, 8
        %s161 = scalar_lea.vmem %s1, %s160
      $region16: #{rebnconv_forward.3} parent=11 // pred_fallthru
        _
      // Predicated region
      $region17: #{rebnconv_forward.3} parent=11 // pred_check
        %p162 = pneg %p110
      $region18: #{rebnconv_forward.3} parent=11 // pred_check_branch
        %164 = sbr.rel (%p162) target = $region20
      $region19: #{rebnconv_forward.3} parent=11 // pred_region
        %p165 = scmp.lt.s32.totalorder %s20, 0
        %s166 = scalar_select %p165, %s20, 0
        %s167 = smul.addr %s166, 8
        %s168 = scalar_lea.vmem %s2, %s167
      $region20: #{rebnconv_forward.3} parent=11 // pred_fallthru
        _
    $region12: #{rebnconv_forward.3} parent=5 // pred_fallthru
      _
    %p169 = scmp.lt.s32.totalorder %s9, 2
    // Predicated region
    $region21: #{rebnconv_forward.3} parent=5 // pred_check
      %p170 = pneg %p169
    $region22: #{rebnconv_forward.3} parent=5 // pred_check_branch
      %172 = sbr.rel (%p170) target = $region24
    $region23: #{rebnconv_forward.3} parent=5 // pred_region
      // Predicated region
      $region25: #{rebnconv_forward.3} parent=23 // pred_check
        %p173 = pneg %p52
      $region26: #{rebnconv_forward.3} parent=23 // pred_check_branch
        %175 = sbr.rel (%p173) target = $region28
      $region27: #{rebnconv_forward.3} parent=23 // pred_region
        %s176 = smul.u32 2, %s18
        %p177 = scmp.lt.s32.totalorder %s16, 1
        %s178 = scalar_select %p177, %s16, 1
        %p179 = scmp.lt.s32.totalorder %s17, 0
        %s180 = scalar_select %p179, %s17, 0
        %p181 = scmp.lt.s32.totalorder %s176, 1
        %s182 = scalar_select %p181, %s176, 1
        %s183 = smul.addr %s180, 2
        %s184 = sadd.s32 %s182, %s183
        %s185 = smul.addr %s178, 2
        %s186 = sadd.s32 %s184, %s185
        %s187 = smul.addr %s186, 8
        %s188 = scalar_lea.vmem %s0, %s187
        %s189 = smul.u32 2, %s18
      $region28: #{rebnconv_forward.3} parent=23 // pred_fallthru
        _
    $region24: #{rebnconv_forward.3} parent=5 // pred_fallthru
      _
    %p190 = scmp.le.s32.totalorder 1, %s9
    %p191 = scmp.lt.s32.totalorder %s9, 3
    %p192 = pnand %p190, %p191
    %p193 = pneg %p192
    // Predicated region
    $region29: #{rebnconv_forward.3} parent=5 // pred_check
      _
    $region30: #{rebnconv_forward.3} parent=5 // pred_check_branch
      %195 = sbr.rel (%p192) target = $region32
    $region31: #{rebnconv_forward.3} parent=5 // pred_region
      %s196 = ssub.s32 %s9, 1
      %s197 = smul.u32 2, %s21
      %p198 = scmp.lt.s32.totalorder %s19, 1
      %s199 = scalar_select %p198, %s19, 1
      %p200 = scmp.lt.s32.totalorder %s20, 0
      %s201 = scalar_select %p200, %s20, 0
      %p202 = scmp.lt.s32.totalorder %s197, 1
      %s203 = scalar_select %p202, %s197, 1
      %s204 = smul.addr %s201, 2
      %s205 = sadd.s32 %s203, %s204
      %s206 = smul.addr %s199, 2
      %s207 = sadd.s32 %s205, %s206
      %s208 = smul.addr %s207, 8
      %s209 = scalar_lea.vmem %s0, %s208
      %p210 = pneg %p58
      %p211 = pneg %p55
      %p212 = scmp.lt.s32.totalorder %s20, 0
      %s213 = scalar_select %p212, %s20, 0
      %s214 = smul.addr %s213, 8
      %s215 = scalar_lea.vmem %s1, %s214
      %p216 = pneg %p84
      %p217 = pneg %p81
      %p218 = scmp.lt.s32.totalorder %s20, 0
      %s219 = scalar_select %p218, %s20, 0
      %s220 = smul.addr %s219, 8
      %s221 = scalar_lea.vmem %s2, %s220
      %p222 = pneg %p110
      %p223 = pneg %p107
      %p224 = pneg %p140
      %p225 = pneg %p137
      %s226 = smul.u32 2, %s21
      %p227 = scmp.lt.s32.totalorder %s19, 1
      %s228 = scalar_select %p227, %s19, 1
      %p229 = scmp.lt.s32.totalorder %s20, 0
      %s230 = scalar_select %p229, %s20, 0
      %p231 = scmp.lt.s32.totalorder %s226, 1
      %s232 = scalar_select %p231, %s226, 1
      %s233 = smul.addr %s230, 2
      %s234 = sadd.s32 %s232, %s233
      %s235 = smul.addr %s228, 2
      %s236 = sadd.s32 %s234, %s235
      %s237 = smul.addr %s236, 8
      %s238 = scalar_lea.vmem %s3, %s237
      %s239 = smul.u32 2, %s21
      %p240 = scmp.lt.s32.totalorder %s19, 1
      %s241 = scalar_select %p240, %s19, 1
      %p242 = scmp.lt.s32.totalorder %s20, 0
      %s243 = scalar_select %p242, %s20, 0
      %p244 = scmp.lt.s32.totalorder %s239, 1
      %s245 = scalar_select %p244, %s239, 1
      %s246 = smul.addr %s243, 2
      %s247 = sadd.s32 %s245, %s246
      %s248 = smul.addr %s241, 2
      %s249 = sadd.s32 %s247, %s248
      %s250 = smul.addr %s249, 8
      %s251 = scalar_lea.vmem %s0, %s250
      %s252 = smul.u32 2, %s21
      %p253 = scmp.lt.s32.totalorder %s20, 0
      %s254 = scalar_select %p253, %s20, 0
      %s255 = smul.addr %s254, 8
      %s256 = scalar_lea.vmem %s1, %s255
      %p257 = scmp.lt.s32.totalorder %s20, 0
      %s258 = scalar_select %p257, %s20, 0
      %s259 = smul.addr %s258, 8
      %s260 = scalar_lea.vmem %s2, %s259
      %s261 = smul.u32 2, %s21
      %p262 = scmp.lt.s32.totalorder %s19, 1
      %s263 = scalar_select %p262, %s19, 1
      %p264 = scmp.lt.s32.totalorder %s20, 0
      %s265 = scalar_select %p264, %s20, 0
      %p266 = scmp.lt.s32.totalorder %s261, 1
      %s267 = scalar_select %p266, %s261, 1
      %s268 = smul.addr %s265, 2
      %s269 = sadd.s32 %s267, %s268
      %s270 = smul.addr %s263, 2
      %s271 = sadd.s32 %s269, %s270
      %s272 = smul.addr %s271, 8
      %s273 = scalar_lea.vmem %s3, %s272
      %s274 = smul.u32 2, %s21
      %v275 = vld [vmem:[%s251] sm:$0xff]
      %v276 = vld [vmem:[%s251 + $0x8] sm:$0xff]
      %v277 = vld [vmem:[%s256] sm:$0xff]
      %279 = vset.pattern.permute.xlu0 0
      %280 = vperm.xlu0 %279, %v277
      %v281 = vpop.permute.xlu0 %280
      %v283 = vmul.f32 %v275, %v281
      %v284 = vmul.f32 %v276, %v281
      %v285 = vld [vmem:[%s260] sm:$0xff]
      %287 = vset.pattern.permute.xlu0 0
      %288 = vperm.xlu0 %287, %v285
      %v289 = vpop.permute.xlu0 %288
      %v291 = vadd.f32 %v283, %v289
      %v292 = vadd.f32 %v284, %v289
      %v293 = vmul.f32 %v291, 0.01
      %v294 = vmul.f32 %v292, 0.01
      %v295 = vmax.f32 %v291, %v293
      %v296 = vmax.f32 %v292, %v294
      %297 = vst [vmem:[%s273] sm:$0xff] %v295
      %298 = vst [vmem:[%s273 + $0x8] sm:$0xff] %v296
      %s299 = smul.u32 2, %s21
      %p300 = scmp.lt.s32.totalorder %s19, 1
      %s301 = scalar_select %p300, %s19, 1
      %p302 = scmp.lt.s32.totalorder %s20, 0
      %s303 = scalar_select %p302, %s20, 0
      %p304 = scmp.lt.s32.totalorder %s299, 1
      %s305 = scalar_select %p304, %s299, 1
      %s306 = smul.addr %s303, 2
      %s307 = sadd.s32 %s305, %s306
      %s308 = smul.addr %s301, 2
      %s309 = sadd.s32 %s307, %s308
      %s310 = smul.addr %s309, 8
      %s311 = scalar_lea.vmem %s3, %s310
      // Predicated region
      $region33: #{rebnconv_forward.3} parent=31 // pred_check
        %p312 = pneg %p137
      $region34: #{rebnconv_forward.3} parent=31 // pred_check_branch
        %314 = sbr.rel (%p312) target = $region36
      $region35: #{rebnconv_forward.3} parent=31 // pred_region
        %s315 = smul.u32 2, %s21
      $region36: #{rebnconv_forward.3} parent=31 // pred_fallthru
        _
    $region32: #{rebnconv_forward.3} parent=5 // pred_fallthru
      _
    %p316 = scmp.le.s32.totalorder 2, %s9
    // Predicated region
    $region37: #{rebnconv_forward.3} parent=5 // pred_check
      %p317 = pneg %p316
    $region38: #{rebnconv_forward.3} parent=5 // pred_check_branch
      %319 = sbr.rel (%p317) target = $region40
    $region39: #{rebnconv_forward.3} parent=5 // pred_region
      %s320 = ssub.s32 %s9, 2
      // Predicated region
      $region41: #{rebnconv_forward.3} parent=39 // pred_check
        %p321 = pneg %p143
      $region42: #{rebnconv_forward.3} parent=39 // pred_check_branch
        %323 = sbr.rel (%p321) target = $region44
      $region43: #{rebnconv_forward.3} parent=39 // pred_region
        %s324 = smul.u32 2, %s24
        %p325 = scmp.lt.s32.totalorder %s22, 1
        %s326 = scalar_select %p325, %s22, 1
        %p327 = scmp.lt.s32.totalorder %s23, 0
        %s328 = scalar_select %p327, %s23, 0
        %p329 = scmp.lt.s32.totalorder %s324, 1
        %s330 = scalar_select %p329, %s324, 1
        %s331 = smul.addr %s328, 2
        %s332 = sadd.s32 %s330, %s331
        %s333 = smul.addr %s326, 2
        %s334 = sadd.s32 %s332, %s333
        %s335 = smul.addr %s334, 8
        %s336 = scalar_lea.vmem %s3, %s335
      $region44: #{rebnconv_forward.3} parent=39 // pred_fallthru
        _
    $region40: #{rebnconv_forward.3} parent=5 // pred_fallthru
      _
  $region6: #{rebnconv_forward.3} parent=0 // loop_footer
    %s13 = sadd.s32 1, %s9
  $region7: #{rebnconv_forward.3} parent=0 // loop_footer_branch
    %8 = sbr.rel target = $region3
  $region8: #{rebnconv_forward.3} parent=0 // loop_exit
    _

// kernel: rebnconv_forward.2
$region0: #{rebnconv_forward.2}
  #allocation0 [shape = 'u32[]', space=smem, size = 0x4, offset = 0x4, fixed_abs, tag = 'smem constant byte address 0x4 - core index']
  #allocation1 [shape = 'u32[144,128]{1,0:T(1,128)}', space=vmem, size = 0x12000, scoped, tag = 'internal scratch']
  #allocation2 [shape = 'f32[8,1]{1,0:T(8,128)}', space=vmem, size = 0x1000, scoped, tag = 'scratch operand']
  #allocation3 [shape = 'f32[8,1]{1,0:T(8,128)}', space=vmem, size = 0x1000, scoped, tag = 'scratch operand']
  %s0 = inlined_call_operand.vmem [shape: f32[2,12,256], index: 0, kind: input, shape index: {}]
  %s1 = inlined_call_operand.vmem [shape: f32[3,8,12], index: 1, kind: input, shape index: {}]
  %s2 = inlined_call_operand.vmem [shape: f32[2,8,256], index: 2, kind: output, shape index: {0}]
  %s3 = inlined_call_operand.vmem [shape: f32[2,1,1,8,2], index: 3, kind: output, shape index: {1}]
  %4 = xla_tuple %s2, %s3
  %s5 = sld [smem:[#allocation0]]
  $region61: #{rebnconv_forward.2} parent=0
    _
  %s7 = ssub.s32 1, %s5
  %s8 = scalar_select 0, %s7, %s5
  loop: start=0, step=1, limit=4
  $region2: #{rebnconv_forward.2} parent=0 // loop_pre_header
    _
  $region3: #{rebnconv_forward.2} parent=0 // loop_header
    %s10 = sphi 0, %s14
    %p11 = scmp.ge.s32.totalorder %s10, 4
    %s17 = sphi 0, %s43
    %s18 = sphi 0, %s39
    %s19 = sphi 0, %s35
    %s20 = sphi 0, %s31
    %s21 = sphi 0, %s17
    %s22 = sphi 0, %s18
    %s23 = sphi 0, %s19
    %s24 = sphi 0, %s20
    %s25 = sphi 0, %s21
    %s26 = sphi 0, %s22
    %s27 = sphi 0, %s23
    %s28 = sphi 0, %s24
    %s50 = sphi 0, %s52
    %s53 = sphi 0, %s50
    %s54 = sphi 0, %s53
    %s70 = sphi 0, %s54
    %s76 = sphi 0, %s78
    %s79 = sphi 0, %s76
    %s80 = sphi 0, %s79
    %s96 = sphi 0, %s80
    %s108 = sphi 0, %s110
    %s111 = sphi 0, %s108
    %s112 = sphi 0, %s111
    %s128 = sphi 0, %s112
    %s138 = sphi 0, %s140
    %s141 = sphi 0, %s138
    %s142 = sphi 0, %s141
    %s158 = sphi 0, %s142
  $region4: #{rebnconv_forward.2} parent=0 // loop_header_branch
    %13 = sbr.rel (%p11) target = $region8
  $region5: #{rebnconv_forward.2} parent=0 // loop_body
    %s15 = ssub.s32 %s10, 1
    %s16 = ssub.s32 %s10, 2
    %s29 = sadd.s32 1, %s20
    %p30 = scmp.ge.s32.totalorder %s29, 1
    %s31 = scalar_select %p30, 0, %s29
    %s32 = sadd.s32 1, %s19
    %s33 = scalar_select %p30, %s32, %s19
    %p34 = scmp.ge.s32.totalorder %s33, 1
    %s35 = scalar_select %p34, 0, %s33
    %s36 = sadd.s32 1, %s18
    %s37 = scalar_select %p34, %s36, %s18
    %p38 = scmp.ge.s32.totalorder %s37, 1
    %s39 = scalar_select %p38, 0, %s37
    %s40 = sadd.s32 1, %s17
    %s41 = scalar_select %p38, %s40, %s17
    %p42 = scmp.ge.s32.totalorder %s41, 2
    %s43 = scalar_select %p42, 0, %s41
    %s44 = sadd.s32 %s19, %s20
    %s45 = sadd.s32 %s35, %s31
    %s46 = ssub.s32 %s17, %s43
    %s47 = ssub.s32 %s44, %s45
    %s48 = sor.u32 %s46, %s47
    %p49 = scmp.eq.s32.totalorder %s48, 0
    %s51 = sadd.s32 %s50, 1
    %s52 = scalar_select %p49, %s50, %s51
    %p55 = pneg %p49
    %p56 = scmp.eq.s32.totalorder %s10, 1
    %p57 = por %p55, %p56
    %p58 = scmp.ne.s32.totalorder %s50, %s53
    %p59 = scmp.eq.s32.totalorder %s10, 0
    %p60 = por %p58, %p59
    %p61 = scmp.ne.s32.totalorder %s50, %s53
    %p62 = scmp.eq.s32.totalorder %s15, 1
    %p63 = por %p61, %p62
    %p64 = scmp.ne.s32.totalorder %s53, %s54
    %p65 = scmp.eq.s32.totalorder %s15, 0
    %p66 = por %p64, %p65
    %p67 = scmp.ne.s32.totalorder %s53, %s54
    %p68 = scmp.eq.s32.totalorder %s16, 1
    %p69 = por %p67, %p68
    %p71 = scmp.ne.s32.totalorder %s54, %s70
    %p72 = scmp.eq.s32.totalorder %s16, 0
    %p73 = por %p71, %p72
    %s74 = ssub.s32 %s18, %s39
    %p75 = scmp.eq.s32.totalorder %s74, 0
    %s77 = sadd.s32 %s76, 1
    %s78 = scalar_select %p75, %s76, %s77
    %p81 = pneg %p75
    %p82 = scmp.eq.s32.totalorder %s10, 1
    %p83 = por %p81, %p82
    %p84 = scmp.ne.s32.totalorder %s76, %s79
    %p85 = scmp.eq.s32.totalorder %s10, 0
    %p86 = por %p84, %p85
    %p87 = scmp.ne.s32.totalorder %s76, %s79
    %p88 = scmp.eq.s32.totalorder %s15, 1
    %p89 = por %p87, %p88
    %p90 = scmp.ne.s32.totalorder %s79, %s80
    %p91 = scmp.eq.s32.totalorder %s15, 0
    %p92 = por %p90, %p91
    %p93 = scmp.ne.s32.totalorder %s79, %s80
    %p94 = scmp.eq.s32.totalorder %s16, 1
    %p95 = por %p93, %p94
    %p97 = scmp.ne.s32.totalorder %s80, %s96
    %p98 = scmp.eq.s32.totalorder %s16, 0
    %p99 = por %p97, %p98
    %s100 = sadd.s32 %s19, %s20
    %s101 = sadd.s32 %s35, %s31
    %s102 = ssub.s32 %s17, %s43
    %s103 = ssub.s32 %s18, %s39
    %s104 = sor.u32 %s102, %s103
    %s105 = ssub.s32 %s100, %s101
    %s106 = sor.u32 %s104, %s105
    %p107 = scmp.eq.s32.totalorder %s106, 0
    %s109 = sadd.s32 %s108, 1
    %s110 = scalar_select %p107, %s108, %s109
    %p113 = pneg %p107
    %p114 = scmp.eq.s32.totalorder %s10, 1
    %p115 = por %p113, %p114
    %p116 = scmp.ne.s32.totalorder %s108, %s111
    %p117 = scmp.eq.s32.totalorder %s10, 0
    %p118 = por %p116, %p117
    %p119 = scmp.ne.s32.totalorder %s108, %s111
    %p120 = scmp.eq.s32.totalorder %s15, 1
    %p121 = por %p119, %p120
    %p122 = scmp.ne.s32.totalorder %s111, %s112
    %p123 = scmp.eq.s32.totalorder %s15, 0
    %p124 = por %p122, %p123
    %p125 = scmp.ne.s32.totalorder %s111, %s112
    %p126 = scmp.eq.s32.totalorder %s16, 1
    %p127 = por %p125, %p126
    %p129 = scmp.ne.s32.totalorder %s112, %s128
    %p130 = scmp.eq.s32.totalorder %s16, 0
    %p131 = por %p129, %p130
    %s132 = ssub.s32 %s17, %s43
    %s133 = ssub.s32 %s18, %s39
    %s134 = sor.u32 %s132, %s133
    %s135 = ssub.s32 %s19, %s35
    %s136 = sor.u32 %s134, %s135
    %p137 = scmp.eq.s32.totalorder %s136, 0
    %s139 = sadd.s32 %s138, 1
    %s140 = scalar_select %p137, %s138, %s139
    %p143 = pneg %p137
    %p144 = scmp.eq.s32.totalorder %s10, 1
    %p145 = por %p143, %p144
    %p146 = scmp.ne.s32.totalorder %s138, %s141
    %p147 = scmp.eq.s32.totalorder %s10, 0
    %p148 = por %p146, %p147
    %p149 = scmp.ne.s32.totalorder %s138, %s141
    %p150 = scmp.eq.s32.totalorder %s15, 1
    %p151 = por %p149, %p150
    %p152 = scmp.ne.s32.totalorder %s141, %s142
    %p153 = scmp.eq.s32.totalorder %s15, 0
    %p154 = por %p152, %p153
    %p155 = scmp.ne.s32.totalorder %s141, %s142
    %p156 = scmp.eq.s32.totalorder %s16, 1
    %p157 = por %p155, %p156
    %p159 = scmp.ne.s32.totalorder %s142, %s158
    %p160 = scmp.eq.s32.totalorder %s16, 0
    %p161 = por %p159, %p160
    %p162 = scmp.le.s32.totalorder 1, %s10
    %p163 = scmp.lt.s32.totalorder %s10, 3
    %p164 = pnand %p162, %p163
    %p165 = pneg %p164
    // Predicated region
    $region9: #{rebnconv_forward.2} parent=5 // pred_check
      _
    $region10: #{rebnconv_forward.2} parent=5 // pred_check_branch
      %167 = sbr.rel (%p164) target = $region12
    $region11: #{rebnconv_forward.2} parent=5 // pred_region
      %s168 = ssub.s32 %s10, 1
      // Predicated region
      $region13: #{rebnconv_forward.2} parent=11 // pred_check
        %p169 = pneg %p92
      $region14: #{rebnconv_forward.2} parent=11 // pred_check_branch
        %171 = sbr.rel (%p169) target = $region16
      $region15: #{rebnconv_forward.2} parent=11 // pred_region
        %p172 = scmp.lt.s32.totalorder %s22, 0
        %s173 = scalar_select %p172, %s22, 0
        %s174 = smul.addr %s173, 8
        %s175 = scalar_lea.vmem %s1, %s174
      $region16: #{rebnconv_forward.2} parent=11 // pred_fallthru
        _
    $region12: #{rebnconv_forward.2} parent=5 // pred_fallthru
      _
    %p176 = scmp.lt.s32.totalorder %s10, 2
    // Predicated region
    $region17: #{rebnconv_forward.2} parent=5 // pred_check
      %p177 = pneg %p176
    $region18: #{rebnconv_forward.2} parent=5 // pred_check_branch
      %179 = sbr.rel (%p177) target = $region20
    $region19: #{rebnconv_forward.2} parent=5 // pred_region
      // Predicated region
      $region21: #{rebnconv_forward.2} parent=19 // pred_check
        %p180 = pneg %p60
      $region22: #{rebnconv_forward.2} parent=19 // pred_check_branch
        %182 = sbr.rel (%p180) target = $region24
      $region23: #{rebnconv_forward.2} parent=19 // pred_region
        %s183 = sadd.s32 %s19, %s20
        %s184 = smul.u32 2, %s183
        %p185 = scmp.lt.s32.totalorder %s17, 1
        %s186 = scalar_select %p185, %s17, 1
        %p187 = scmp.lt.s32.totalorder %s184, 1
        %s188 = scalar_select %p187, %s184, 1
        %s189 = smul.addr %s186, 4
        %s190 = sadd.s32 %s188, %s189
        %s191 = smul.addr %s190, 8
        %s192 = scalar_lea.vmem %s0, %s191
        %s193 = sadd.s32 %s19, %s20
        %s194 = smul.u32 2, %s193
      $region24: #{rebnconv_forward.2} parent=19 // pred_fallthru
        _
    $region20: #{rebnconv_forward.2} parent=5 // pred_fallthru
      _
    %p195 = scmp.le.s32.totalorder 1, %s10
    %p196 = scmp.lt.s32.totalorder %s10, 3
    %p197 = pnand %p195, %p196
    %p198 = pneg %p197
    // Predicated region
    $region25: #{rebnconv_forward.2} parent=5 // pred_check
      _
    $region26: #{rebnconv_forward.2} parent=5 // pred_check_branch
      %200 = sbr.rel (%p197) target = $region28
    $region27: #{rebnconv_forward.2} parent=5 // pred_region
      %s201 = ssub.s32 %s10, 1
      %s202 = sadd.s32 %s23, %s24
      %s203 = smul.u32 2, %s202
      %p204 = scmp.lt.s32.totalorder %s21, 1
      %s205 = scalar_select %p204, %s21, 1
      %p206 = scmp.lt.s32.totalorder %s203, 1
      %s207 = scalar_select %p206, %s203, 1
      %s208 = smul.addr %s205, 4
      %s209 = sadd.s32 %s207, %s208
      %s210 = smul.addr %s209, 8
      %s211 = scalar_lea.vmem %s0, %s210
      %p212 = pneg %p66
      %p213 = pneg %p63
      %p214 = scmp.lt.s32.totalorder %s22, 0
      %s215 = scalar_select %p214, %s22, 0
      %s216 = smul.addr %s215, 8
      %s217 = scalar_lea.vmem %s1, %s216
      %p218 = pneg %p92
      %p219 = pneg %p89
      %p220 = pneg %p124
      %p221 = pneg %p121
      %s222 = sadd.s32 %s23, %s24
      %s223 = smul.u32 2, %s222
      %p224 = scmp.lt.s32.totalorder %s21, 1
      %s225 = scalar_select %p224, %s21, 1
      %p226 = scmp.lt.s32.totalorder %s22, 0
      %s227 = scalar_select %p226, %s22, 0
      %p228 = scmp.lt.s32.totalorder %s223, 1
      %s229 = scalar_select %p228, %s223, 1
      %s230 = smul.addr %s227, 2
      %s231 = sadd.s32 %s229, %s230
      %s232 = smul.addr %s225, 2
      %s233 = sadd.s32 %s231, %s232
      %s234 = smul.addr %s233, 8
      %s235 = scalar_lea.vmem %s2, %s234
      %p236 = pneg %p154
      %p237 = pneg %p151
      %p238 = scmp.lt.s32.totalorder %s21, 1
      %s239 = scalar_select %p238, %s21, 1
      %p240 = scmp.lt.s32.totalorder %s22, 0
      %s241 = scalar_select %p240, %s22, 0
      %p242 = scmp.lt.s32.totalorder %s23, 0
      %s243 = scalar_select %p242, %s23, 0
      %s244 = sadd.s32 %s243, %s241
      %s245 = sadd.s32 %s244, %s239
      %s246 = smul.addr %s245, 8
      %s247 = scalar_lea.vmem %s3, %s246
      %s248 = sadd.s32 %s23, %s24
      %s249 = smul.u32 2, %s248
      %p250 = scmp.lt.s32.totalorder %s21, 1
      %s251 = scalar_select %p250, %s21, 1
      %p252 = scmp.lt.s32.totalorder %s249, 1
      %s253 = scalar_select %p252, %s249, 1
      %s254 = smul.addr %s251, 4
      %s255 = sadd.s32 %s253, %s254
      %s256 = smul.addr %s255, 8
      %s257 = scalar_lea.vmem %s0, %s256
      %s258 = sadd.s32 %s23, %s24
      %s259 = smul.u32 2, %s258
      %p260 = scmp.lt.s32.totalorder %s22, 0
      %s261 = scalar_select %p260, %s22, 0
      %s262 = smul.addr %s261, 8
      %s263 = scalar_lea.vmem %s1, %s262
      %s264 = sadd.s32 %s23, %s24
      %s265 = smul.u32 2, %s264
      %p266 = scmp.lt.s32.totalorder %s21, 1
      %s267 = scalar_select %p266, %s21, 1
      %p268 = scmp.lt.s32.totalorder %s22, 0
      %s269 = scalar_select %p268, %s22, 0
      %p270 = scmp.lt.s32.totalorder %s265, 1
      %s271 = scalar_select %p270, %s265, 1
      %s272 = smul.addr %s269, 2
      %s273 = sadd.s32 %s271, %s272
      %s274 = smul.addr %s267, 2
      %s275 = sadd.s32 %s273, %s274
      %s276 = smul.addr %s275, 8
      %s277 = scalar_lea.vmem %s2, %s276
      %s278 = sadd.s32 %s23, %s24
      %s279 = smul.u32 2, %s278
      %p280 = scmp.lt.s32.totalorder %s21, 1
      %s281 = scalar_select %p280, %s21, 1
      %p282 = scmp.lt.s32.totalorder %s22, 0
      %s283 = scalar_select %p282, %s22, 0
      %p284 = scmp.lt.s32.totalorder %s23, 0
      %s285 = scalar_select %p284, %s23, 0
      %s286 = sadd.s32 %s285, %s283
      %s287 = sadd.s32 %s286, %s281
      %s288 = smul.addr %s287, 8
      %s289 = scalar_lea.vmem %s3, %s288
      %v290 = vld [vmem:[%s257] sm:$0xff]
      %v291 = vld [vmem:[%s257 + $0x8] sm:$0xff]
      %v292 = vld [vmem:[%s257 + $0x10] sm:$0xf]
      %v293 = vld [vmem:[%s257 + $0x18] sm:$0xf]
      %v294 = vlaneseq
      %v295 = vand.u32 %v294, 127
      %v296 = vadd.s32 %v295, 128
      %vm297 = vcmp.lt.s32.totalorder %v295, 0
      %v298 = vsub.s32 0, %v295
      %v299 = vsel %vm297, %v298, %v295
      %v300 = vshrl.u32 %v299, 4
      %v301 = vand.u32 %v299, 15
      %v302 = vsub.s32 0, %v301
      %v303 = vsel %vm297, %v302, %v301
      %vm304 = vcmp.lt.s32.totalorder %v296, 0
      %v305 = vsub.s32 0, %v296
      %v306 = vsel %vm304, %v305, %v296
      %v307 = vshrl.u32 %v306, 4
      %v308 = vand.u32 %v306, 15
      %v309 = vsub.s32 0, %v308
      %v310 = vsel %vm304, %v309, %v308
      %vm311 = vcmp.ne.s32.totalorder %v303, 0
      %vm312 = vcmp.ne.s32.totalorder %v310, 0
      %vm313 = vcmp.lt.s32.totalorder %v303, 0
      %vm314 = vcmp.lt.s32.totalorder %v310, 0
      %vm315 = vmand %vm313, %vm311
      %vm316 = vmand %vm314, %vm312
      %v317 = vadd.s32 %v303, 16
      %v318 = vadd.s32 %v310, 16
      %v319 = vsel %vm315, %v317, %v303
      %v320 = vsel %vm316, %v318, %v310
      %vm321 = vcmp.ge.s32.totalorder %v319, 1
      %vm322 = vcmp.ge.s32.totalorder %v320, 1
      %323 = vrot.lane.b32.xlu0 %v290, 1
      %v324 = vpop.permute.xlu0 %323
      %325 = vrot.lane.b32.xlu0 %v292, 1
      %v326 = vpop.permute.xlu0 %325
      %327 = vrot.lane.b32.xlu0 %v291, 1
      %v328 = vpop.permute.xlu0 %327
      %329 = vrot.lane.b32.xlu0 %v293, 1
      %v330 = vpop.permute.xlu0 %329
      %vm331 = vcmp.lt.s32.totalorder %v295, 1
      %v332 = vsel %vm331, %v324, %v328
      %v333 = vsel %vm331, %v326, %v330
      %v334 = vsel %vm331, %v328, %v324
      %v335 = vsel %vm331, %v330, %v326
      %v336 = vsel %vm321, %v334, 0.0
      %v337 = vsel %vm322, %v332, 0.0
      %v338 = vsel %vm321, %v335, 0.0
      %v339 = vsel %vm322, %v333, 0.0
      %vm340 = vcmp.lt.s32.totalorder %v319, 15
      %vm341 = vcmp.lt.s32.totalorder %v320, 15
      %342 = vrot.lane.b32.xlu0 %v290, 127
      %v343 = vpop.permute.xlu0 %342
      %344 = vrot.lane.b32.xlu0 %v292, 127
      %v345 = vpop.permute.xlu0 %344
      %346 = vrot.lane.b32.xlu0 %v291, 127
      %v347 = vpop.permute.xlu0 %346
      %348 = vrot.lane.b32.xlu0 %v293, 127
      %v349 = vpop.permute.xlu0 %348
      %vm350 = vcmp.lt.s32.totalorder %v295, 127
      %v351 = vsel %vm350, %v343, %v347
      %v352 = vsel %vm350, %v345, %v349
      %v353 = vsel %vm350, %v347, %v343
      %v354 = vsel %vm350, %v349, %v345
      %v355 = vsel %vm340, %v351, 0.0
      %v356 = vsel %vm341, %v353, 0.0
      %v357 = vsel %vm340, %v352, 0.0
      %v358 = vsel %vm341, %v354, 0.0
      %v359 = vld [vmem:[%s263] sm:$0xff]
      %s360 = scalar_lea.vmem %s263, 8
      %v361 = vld [vmem:[%s360] sm:$0xff]
      %vm362 = vcmask 97280
      %v364 = vsel %vm362, %v361, 0
      %vm366 = vcmask 1043456
      %v368 = vsel %vm366, %v292, 0
      %v371 = vsel %vm366, %v293, 0
      %373 = vmatprep.subr.mxu0 %v291
      %374 = vmatpush1.msra.mxu0 %v290
      %375 = vmatprep.subr.mxu0 %v371
      %376 = vmatpush1.msra.mxu0 %v368
      %377 = vmatprep.subr.mxu0 0.0
      %378 = vmatpush1.msra.mxu0 0.0
      %379 = vmatprep.subr.mxu0 0.0
      %380 = vmatpush1.msra.mxu0 0.0
      %381 = vmatprep.subr.mxu0 0.0
      %382 = vmatpush1.msra.mxu0 0.0
      %383 = vmatprep.subr.mxu0 0.0
      %384 = vmatpush1.msra.mxu0 0.0
      %385 = vmatprep.subr.mxu0 0.0
      %386 = vmatpush1.msra.mxu0 0.0
      %387 = vmatprep.subr.mxu0 0.0
      %388 = vmatpush1.msra.mxu0 0.0
      %389 = vmatprep.subr.mxu0 0.0
      %390 = vmatpush1.msra.mxu0 0.0
      %391 = vmatprep.subr.mxu0 0.0
      %392 = vmatpush1.msra.mxu0 0.0
      %393 = vmatprep.subr.mxu0 0.0
      %394 = vmatpush1.msra.mxu0 0.0
      %395 = vmatprep.subr.mxu0 0.0
      %396 = vmatpush1.msra.mxu0 0.0
      %397 = vmatprep.subr.mxu0 0.0
      %398 = vmatpush1.msra.mxu0 0.0
      %399 = vmatprep.subr.mxu0 0.0
      %400 = vmatpush1.msra.mxu0 0.0
      %401 = vmatprep.subr.mxu0 0.0
      %402 = vmatpush1.msra.mxu0 0.0
      %403 = vmatprep.subr.mxu0 0.0
      %404 = vmatpush1.msra.mxu0 0.0
      %405 = vmatprep.subr.mxu0 0.0
      %406 = vmatpush1.msra.mxu0 0.0
      %407 = vmatprep.subr.mxu0 0.0
      %408 = vmatpush1.msra.mxu0 0.0
      %409 = vmatprep.subr.mxu0 0.0
      %410 = vmatpush1.msra.mxu0 0.0
      %411 = vmatprep.subr.mxu0 0.0
      %412 = vmatpush1.msra.mxu0 0.0
      %413 = vmatprep.subr.mxu0 0.0
      %414 = vmatpush1.msra.mxu0 0.0
      %415 = vmatprep.subr.mxu0 0.0
      %416 = vmatpush1.msra.mxu0 0.0
      %417 = vmatprep.subr.mxu0 0.0
      %418 = vmatpush1.msra.mxu0 0.0
      %419 = vmatprep.subr.mxu0 0.0
      %420 = vmatpush1.msra.mxu0 0.0
      %421 = vmatprep.subr.mxu0 0.0
      %422 = vmatpush1.msra.mxu0 0.0
      %423 = vmatprep.subr.mxu0 0.0
      %424 = vmatpush1.msra.mxu0 0.0
      %425 = vmatprep.subr.mxu0 0.0
      %426 = vmatpush1.msra.mxu0 0.0
      %427 = vmatprep.subr.mxu0 0.0
      %428 = vmatpush1.msra.mxu0 0.0
      %429 = vmatprep.subr.mxu0 0.0
      %430 = vmatpush1.msra.mxu0 0.0
      %431 = vmatprep.subr.mxu0 0.0
      %432 = vmatpush1.msra.mxu0 0.0
      %433 = vmatprep.subr.mxu0 0.0
      %434 = vmatpush1.msra.mxu0 0.0
      %435 = vmatprep.subr.mxu0 0.0
      %436 = vmatpush1.msra.mxu0 0.0
      %437 = vmatprep.mubr.f32.mxu0 0.0
      %438 = vmatmul.mubr.f32.gmra.mrb[0].mxu0 %v364
      %v439 = vpop.f32.mrb[0].mxu0
      %v440 = vadd.f32 0.0, %v439
      %v441 = vpop.f32.mrb[0].mxu0
      %v442 = vadd.f32 0.0, %v441
      %443 = vdwg.mxu0
      %v445 = vsel %vm362, %v359, 0
      %v448 = vsel %vm366, %v338, 0
      %v451 = vsel %vm366, %v339, 0
      %453 = vmatprep.subr.mxu0 %v337
      %454 = vmatpush1.msra.mxu0 %v336
      %455 = vmatprep.subr.mxu0 %v451
      %456 = vmatpush1.msra.mxu0 %v448
      %457 = vmatprep.subr.mxu0 0.0
      %458 = vmatpush1.msra.mxu0 0.0
      %459 = vmatprep.subr.mxu0 0.0
      %460 = vmatpush1.msra.mxu0 0.0
      %461 = vmatprep.subr.mxu0 0.0
      %462 = vmatpush1.msra.mxu0 0.0
      %463 = vmatprep.subr.mxu0 0.0
      %464 = vmatpush1.msra.mxu0 0.0
      %465 = vmatprep.subr.mxu0 0.0
      %466 = vmatpush1.msra.mxu0 0.0
      %467 = vmatprep.subr.mxu0 0.0
      %468 = vmatpush1.msra.mxu0 0.0
      %469 = vmatprep.subr.mxu0 0.0
      %470 = vmatpush1.msra.mxu0 0.0
      %471 = vmatprep.subr.mxu0 0.0
      %472 = vmatpush1.msra.mxu0 0.0
      %473 = vmatprep.subr.mxu0 0.0
      %474 = vmatpush1.msra.mxu0 0.0
      %475 = vmatprep.subr.mxu0 0.0
      %476 = vmatpush1.msra.mxu0 0.0
      %477 = vmatprep.subr.mxu0 0.0
      %478 = vmatpush1.msra.mxu0 0.0
      %479 = vmatprep.subr.mxu0 0.0
      %480 = vmatpush1.msra.mxu0 0.0
      %481 = vmatprep.subr.mxu0 0.0
      %482 = vmatpush1.msra.mxu0 0.0
      %483 = vmatprep.subr.mxu0 0.0
      %484 = vmatpush1.msra.mxu0 0.0
      %485 = vmatprep.subr.mxu0 0.0
      %486 = vmatpush1.msra.mxu0 0.0
      %487 = vmatprep.subr.mxu0 0.0
      %488 = vmatpush1.msra.mxu0 0.0
      %489 = vmatprep.subr.mxu0 0.0
      %490 = vmatpush1.msra.mxu0 0.0
      %491 = vmatprep.subr.mxu0 0.0
      %492 = vmatpush1.msra.mxu0 0.0
      %493 = vmatprep.subr.mxu0 0.0
      %494 = vmatpush1.msra.mxu0 0.0
      %495 = vmatprep.subr.mxu0 0.0
      %496 = vmatpush1.msra.mxu0 0.0
      %497 = vmatprep.subr.mxu0 0.0
      %498 = vmatpush1.msra.mxu0 0.0
      %499 = vmatprep.subr.mxu0 0.0
      %500 = vmatpush1.msra.mxu0 0.0
      %501 = vmatprep.subr.mxu0 0.0
      %502 = vmatpush1.msra.mxu0 0.0
      %503 = vmatprep.subr.mxu0 0.0
      %504 = vmatpush1.msra.mxu0 0.0
      %505 = vmatprep.subr.mxu0 0.0
      %506 = vmatpush1.msra.mxu0 0.0
      %507 = vmatprep.subr.mxu0 0.0
      %508 = vmatpush1.msra.mxu0 0.0
      %509 = vmatprep.subr.mxu0 0.0
      %510 = vmatpush1.msra.mxu0 0.0
      %511 = vmatprep.subr.mxu0 0.0
      %512 = vmatpush1.msra.mxu0 0.0
      %513 = vmatprep.subr.mxu0 0.0
      %514 = vmatpush1.msra.mxu0 0.0
      %515 = vmatprep.subr.mxu0 0.0
      %516 = vmatpush1.msra.mxu0 0.0
      %517 = vmatprep.mubr.f32.mxu0 0.0
      %518 = vmatmul.mubr.f32.gmra.mrb[0].mxu0 %v445
      %v519 = vpop.f32.mrb[0].mxu0
      %v520 = vadd.f32 %v440, %v519
      %v521 = vpop.f32.mrb[0].mxu0
      %v522 = vadd.f32 %v442, %v521
      %523 = vdwg.mxu0
      %s524 = scalar_lea.vmem %s263, 16
      %v525 = vld [vmem:[%s524] sm:$0xff]
      %v527 = vsel %vm362, %v525, 0
      %v530 = vsel %vm366, %v357, 0
      %v533 = vsel %vm366, %v358, 0
      %535 = vmatprep.subr.mxu0 %v356
      %536 = vmatpush1.msra.mxu0 %v355
      %537 = vmatprep.subr.mxu0 %v533
      %538 = vmatpush1.msra.mxu0 %v530
      %539 = vmatprep.subr.mxu0 0.0
      %540 = vmatpush1.msra.mxu0 0.0
      %541 = vmatprep.subr.mxu0 0.0
      %542 = vmatpush1.msra.mxu0 0.0
      %543 = vmatprep.subr.mxu0 0.0
      %544 = vmatpush1.msra.mxu0 0.0
      %545 = vmatprep.subr.mxu0 0.0
      %546 = vmatpush1.msra.mxu0 0.0
      %547 = vmatprep.subr.mxu0 0.0
      %548 = vmatpush1.msra.mxu0 0.0
      %549 = vmatprep.subr.mxu0 0.0
      %550 = vmatpush1.msra.mxu0 0.0
      %551 = vmatprep.subr.mxu0 0.0
      %552 = vmatpush1.msra.mxu0 0.0
      %553 = vmatprep.subr.mxu0 0.0
      %554 = vmatpush1.msra.mxu0 0.0
      %555 = vmatprep.subr.mxu0 0.0
      %556 = vmatpush1.msra.mxu0 0.0
      %557 = vmatprep.subr.mxu0 0.0
      %558 = vmatpush1.msra.mxu0 0.0
      %559 = vmatprep.subr.mxu0 0.0
      %560 = vmatpush1.msra.mxu0 0.0
      %561 = vmatprep.subr.mxu0 0.0
      %562 = vmatpush1.msra.mxu0 0.0
      %563 = vmatprep.subr.mxu0 0.0
      %564 = vmatpush1.msra.mxu0 0.0
      %565 = vmatprep.subr.mxu0 0.0
      %566 = vmatpush1.msra.mxu0 0.0
      %567 = vmatprep.subr.mxu0 0.0
      %568 = vmatpush1.msra.mxu0 0.0
      %569 = vmatprep.subr.mxu0 0.0
      %570 = vmatpush1.msra.mxu0 0.0
      %571 = vmatprep.subr.mxu0 0.0
      %572 = vmatpush1.msra.mxu0 0.0
      %573 = vmatprep.subr.mxu0 0.0
      %574 = vmatpush1.msra.mxu0 0.0
      %575 = vmatprep.subr.mxu0 0.0
      %576 = vmatpush1.msra.mxu0 0.0
      %577 = vmatprep.subr.mxu0 0.0
      %578 = vmatpush1.msra.mxu0 0.0
      %579 = vmatprep.subr.mxu0 0.0
      %580 = vmatpush1.msra.mxu0 0.0
      %581 = vmatprep.subr.mxu0 0.0
      %582 = vmatpush1.msra.mxu0 0.0
      %583 = vmatprep.subr.mxu0 0.0
      %584 = vmatpush1.msra.mxu0 0.0
      %585 = vmatprep.subr.mxu0 0.0
      %586 = vmatpush1.msra.mxu0 0.0
      %587 = vmatprep.subr.mxu0 0.0
      %588 = vmatpush1.msra.mxu0 0.0
      %589 = vmatprep.subr.mxu0 0.0
      %590 = vmatpush1.msra.mxu0 0.0
      %591 = vmatprep.subr.mxu0 0.0
      %592 = vmatpush1.msra.mxu0 0.0
      %593 = vmatprep.subr.mxu0 0.0
      %594 = vmatpush1.msra.mxu0 0.0
      %595 = vmatprep.subr.mxu0 0.0
      %596 = vmatpush1.msra.mxu0 0.0
      %597 = vmatprep.subr.mxu0 0.0
      %598 = vmatpush1.msra.mxu0 0.0
      %599 = vmatprep.mubr.f32.mxu0 0.0
      %600 = vmatmul.mubr.f32.gmra.mrb[0].mxu0 %v527
      %v601 = vpop.f32.mrb[0].mxu0
      %v602 = vadd.f32 0.0, %v601
      %v603 = vpop.f32.mrb[0].mxu0
      %v604 = vadd.f32 0.0, %v603
      %605 = vdwg.mxu0
      %v606 = vadd.f32 %v520, %v602
      %v607 = vadd.f32 %v522, %v604
      %608 = vst [vmem:[%s277] sm:$0xff] %v606
      %609 = vst [vmem:[%s277 + $0x8] sm:$0xff] %v607
      %v610 = vadd.f32 %v606, %v607
      %611 = vadd.xlane.f32.xlu0 %v610
      %v612 = vpop.xlane.xlu0 %611
      %v613 = vmul.f32 %v612, 0.00390625
      %v614 = vsub.f32 %v606, %v613
      %v615 = vsub.f32 %v607, %v613
      %v616 = vmul.f32 %v614, %v614
      %v617 = vmul.f32 %v615, %v615
      %v618 = vadd.f32 %v616, %v617
      %619 = vadd.xlane.f32.xlu0 %v618
      %v620 = vpop.xlane.xlu0 %619
      %p621 = scmp.eq.s32.totalorder %s24, 0
      // Predicated region
      $region29: #{rebnconv_forward.2} parent=27 // pred_check
        %p622 = pneg %p621
      $region30: #{rebnconv_forward.2} parent=27 // pred_check_branch
        %624 = sbr.rel (%p622) target = $region32
      $region31: #{rebnconv_forward.2} parent=27 // pred_region
        %vm625 = vcmask 7168
        %626 = vst.msk [vmem:[#allocation2] sm:$0xff] %vm625, %v613
        %627 = vst.msk [vmem:[#allocation3] sm:$0xff] %vm625, %v620
      $region32: #{rebnconv_forward.2} parent=27 // pred_fallthru
        _
      %p628 = scmp.gt.s32.totalorder %s24, 0
      // Predicated region
      $region33: #{rebnconv_forward.2} parent=27 // pred_check
        %p629 = pneg %p628
      $region34: #{rebnconv_forward.2} parent=27 // pred_check_branch
        %631 = sbr.rel (%p629) target = $region36
      $region35: #{rebnconv_forward.2} parent=27 // pred_region
        %s632 = scvt.s32.f32 %s24
        %s633 = smul.f32 %s632, 256.0
        %s634 = sadd.f32 %s633, 256.0
        %v635 = vld [vmem:[#allocation2] sm:$0xff]
        %v636 = vsub.f32 %v613, %v635
        %v637 = vstv %s634
        %v638 = vrcp.pop %v637
        %s639 = vtos %v638
        %s640 = smul.f32 256.0, %s639
        %v641 = vstv %s640
        %v642 = vmul.f32 %v636, %v641
        %v643 = vadd.f32 %v635, %v642
        %vm644 = vcmask 7168
        %645 = vst.msk [vmem:[#allocation2] sm:$0xff] %vm644, %v643
        %v646 = vld [vmem:[#allocation3] sm:$0xff]
        %v647 = vadd.f32 %v646, %v620
        %v648 = vmul.f32 %v636, %v636
        %s649 = smul.f32 %s633, 256.0
        %v650 = vstv %s634
        %v651 = vrcp.pop %v650
        %s652 = vtos %v651
        %s653 = smul.f32 %s649, %s652
        %v654 = vstv %s653
        %v655 = vmul.f32 %v648, %v654
        %v656 = vadd.f32 %v647, %v655
        %657 = vst.msk [vmem:[#allocation3] sm:$0xff] %vm644, %v656
      $region36: #{rebnconv_forward.2} parent=27 // pred_fallthru
        _
      // Predicated region
      $region37: #{rebnconv_forward.2} parent=27 // pred_check
        %p658 = pneg %p621
      $region38: #{rebnconv_forward.2} parent=27 // pred_check_branch
        %660 = sbr.rel (%p658) target = $region40
      $region39: #{rebnconv_forward.2} parent=27 // pred_region
        %v661 = vld [vmem:[#allocation2] sm:$0xff]
        %vm662 = vcmask 7168
        %663 = vst.msk [vmem:[%s289] sm:$0xff] %vm662, %v661
        %v664 = vld [vmem:[#allocation3] sm:$0xff]
        %666 = vrot.lane.b32.xlu0 %v664, 1
        %v667 = vpop.permute.xlu0 %666
        %vm669 = vcmask 15368
        %670 = vst.msk [vmem:[%s289] sm:$0xff] %vm669, %v667
      $region40: #{rebnconv_forward.2} parent=27 // pred_fallthru
        _
      %s671 = sadd.s32 %s23, %s24
      %s672 = smul.u32 2, %s671
      %p673 = scmp.lt.s32.totalorder %s21, 1
      %s674 = scalar_select %p673, %s21, 1
      %p675 = scmp.lt.s32.totalorder %s22, 0
      %s676 = scalar_select %p675, %s22, 0
      %p677 = scmp.lt.s32.totalorder %s672, 1
      %s678 = scalar_select %p677, %s672, 1
      %s679 = smul.addr %s676, 2
      %s680 = sadd.s32 %s678, %s679
      %s681 = smul.addr %s674, 2
      %s682 = sadd.s32 %s680, %s681
      %s683 = smul.addr %s682, 8
      %s684 = scalar_lea.vmem %s2, %s683
      %p685 = scmp.lt.s32.totalorder %s21, 1
      %s686 = scalar_select %p685, %s21, 1
      %p687 = scmp.lt.s32.totalorder %s22, 0
      %s688 = scalar_select %p687, %s22, 0
      %p689 = scmp.lt.s32.totalorder %s23, 0
      %s690 = scalar_select %p689, %s23, 0
      %s691 = sadd.s32 %s690, %s688
      %s692 = sadd.s32 %s691, %s686
      %s693 = smul.addr %s692, 8
      %s694 = scalar_lea.vmem %s3, %s693
      // Predicated region
      $region41: #{rebnconv_forward.2} parent=27 // pred_check
        %p695 = pneg %p121
      $region42: #{rebnconv_forward.2} parent=27 // pred_check_branch
        %697 = sbr.rel (%p695) target = $region44
      $region43: #{rebnconv_forward.2} parent=27 // pred_region
        %s698 = sadd.s32 %s23, %s24
        %s699 = smul.u32 2, %s698
      $region44: #{rebnconv_forward.2} parent=27 // pred_fallthru
        _
      // Predicated region
      $region45: #{rebnconv_forward.2} parent=27 // pred_check
        %p700 = pneg %p151
      $region46: #{rebnconv_forward.2} parent=27 // pred_check_branch
        %702 = sbr.rel (%p700) target = $region48
      $region47: #{rebnconv_forward.2} parent=27 // pred_region
        _
      $region48: #{rebnconv_forward.2} parent=27 // pred_fallthru
        _
    $region28: #{rebnconv_forward.2} parent=5 // pred_fallthru
      _
    %p703 = scmp.le.s32.totalorder 2, %s10
    // Predicated region
    $region49: #{rebnconv_forward.2} parent=5 // pred_check
      %p704 = pneg %p703
    $region50: #{rebnconv_forward.2} parent=5 // pred_check_branch
      %706 = sbr.rel (%p704) target = $region52
    $region51: #{rebnconv_forward.2} parent=5 // pred_region
      %s707 = ssub.s32 %s10, 2
      // Predicated region
      $region53: #{rebnconv_forward.2} parent=51 // pred_check
        %p708 = pneg %p127
      $region54: #{rebnconv_forward.2} parent=51 // pred_check_branch
        %710 = sbr.rel (%p708) target = $region56
      $region55: #{rebnconv_forward.2} parent=51 // pred_region
        %s711 = sadd.s32 %s27, %s28
        %s712 = smul.u32 2, %s711
        %p713 = scmp.lt.s32.totalorder %s25, 1
        %s714 = scalar_select %p713, %s25, 1
        %p715 = scmp.lt.s32.totalorder %s26, 0
        %s716 = scalar_select %p715, %s26, 0
        %p717 = scmp.lt.s32.totalorder %s712, 1
        %s718 = scalar_select %p717, %s712, 1
        %s719 = smul.addr %s716, 2
        %s720 = sadd.s32 %s718, %s719
        %s721 = smul.addr %s714, 2
        %s722 = sadd.s32 %s720, %s721
        %s723 = smul.addr %s722, 8
        %s724 = scalar_lea.vmem %s2, %s723
      $region56: #{rebnconv_forward.2} parent=51 // pred_fallthru
        _
      // Predicated region
      $region57: #{rebnconv_forward.2} parent=51 // pred_check
        %p725 = pneg %p157
      $region58: #{rebnconv_forward.2} parent=51 // pred_check_branch
        %727 = sbr.rel (%p725) target = $region60
      $region59: #{rebnconv_forward.2} parent=51 // pred_region
        %p728 = scmp.lt.s32.totalorder %s25, 1
        %s729 = scalar_select %p728, %s25, 1
        %p730 = scmp.lt.s32.totalorder %s26, 0
        %s731 = scalar_select %p730, %s26, 0
        %p732 = scmp.lt.s32.totalorder %s27, 0
        %s733 = scalar_select %p732, %s27, 0
        %s734 = sadd.s32 %s733, %s731
        %s735 = sadd.s32 %s734, %s729
        %s736 = smul.addr %s735, 8
        %s737 = scalar_lea.vmem %s3, %s736
      $region60: #{rebnconv_forward.2} parent=51 // pred_fallthru
        _
    $region52: #{rebnconv_forward.2} parent=5 // pred_fallthru
      _
  $region6: #{rebnconv_forward.2} parent=0 // loop_footer
    %s14 = sadd.s32 1, %s10
  $region7: #{rebnconv_forward.2} parent=0 // loop_footer_branch
    %9 = sbr.rel target = $region3
  $region8: #{rebnconv_forward.2} parent=0 // loop_exit
    _

</llo_original>
